<compile_context>
chip_gen: v6e
topology: v6e:2x2x1
jax: 0.10.0
libtpu: 0.0.40
codegen_flags: <defaults>
</compile_context>

<pallas_src>
import jax
import jax.numpy as jnp
from jax.experimental import pallas as pl
from jax.experimental.pallas import tpu as pltpu

DROP_P = 0.2          # matches `drop_p = 0.2` in the reference script
LANE = 128
NEG_INF = -1e30


def _round_up(a, m):
    return (a + m - 1) // m * m


# --------------------------------------------------------------------------
# Kernel
# --------------------------------------------------------------------------
def _make_mlp_kernel(n_hidden: int, train: bool):
    """Fused MLP kernel for `n_hidden` hidden layers (one batch tile/step)."""

    def kernel(*refs):
        x_ref = refs[0]
        if train:
            mask_refs = refs[1:1 + n_hidden]
            wb = refs[1 + n_hidden:-1]
        else:
            mask_refs = ()
            wb = refs[1:-1]
        o_ref = refs[-1]
        wo_ref, bo_ref = wb[2 * n_hidden], wb[2 * n_hidden + 1]

        # In-kernel f32 -> bf16 cast of the activation tile (MXU operand);
        # avoids a separate wrapper-side cast pass over x in HBM.
        x = x_ref[...].astype(jnp.bfloat16)
        for li in range(n_hidden):
            w_ref, b_ref = wb[2 * li], wb[2 * li + 1]
            h = jnp.dot(x, w_ref[...], preferred_element_type=jnp.float32)
            h = h + b_ref[...]                  # (1, H) bias broadcasts
            h = jnp.maximum(h, 0.0)             # ReLU (f32 on the VPU)
            if train:
                # 0/1 keep mask; the 1/(1-p) scale is folded into the next
                # layer's weights by prepare_params().
                h = h * mask_refs[li][...].astype(jnp.float32)
            x = h.astype(jnp.bfloat16)          # bf16 operand for next matmul

        logits = jnp.dot(x, wo_ref[...], preferred_element_type=jnp.float32)
        logits = logits + bo_ref[...]           # padded lanes carry -1e30

        # log_softmax along dim=1; padded logits underflow to 0 in the sum.
        m = jnp.max(logits, axis=-1, keepdims=True)
        lse = m + jnp.log(jnp.sum(jnp.exp(logits - m), axis=-1, keepdims=True))
        o_ref[...] = (logits - lse).astype(o_ref.dtype)

    return kernel


# --------------------------------------------------------------------------
# Parameters (PyTorch-style Linear init, stored (in_features, out_features))
# --------------------------------------------------------------------------
def init_params(key, input_size, hidden_layers, output_size):
    """U(-1/sqrt(fan_in), 1/sqrt(fan_in)) init, like torch.nn.Linear."""
    params = []
    sizes = [input_size] + list(hidden_layers) + [output_size]
    for fan_in, fan_out in zip(sizes[:-1], sizes[1:]):
        key, kw, kb = jax.random.split(key, 3)
        bound = 1.0 / (fan_in ** 0.5)
        w = jax.random.uniform(kw, (fan_in, fan_out), jnp.float32, -bound, bound)
        b = jax.random.uniform(kb, (1, fan_out), jnp.float32, -bound, bound)
        params.append((w, b))
    return params


# --------------------------------------------------------------------------
# One-time parameter preparation (hoisted out of the per-step hot path)
# --------------------------------------------------------------------------
def prepare_params(params, *, train=False):
    """Fold the inverted-dropout scale into downstream weights, lane-pad the
    output layer to 128 and cast weights to bf16.  Call once, reuse."""
    inv_keep = 1.0 / (1.0 - DROP_P)
    ws, bs = [], []
    for li, (w, b) in enumerate(params):
        w = jnp.asarray(w, jnp.float32)
        b = jnp.asarray(b, jnp.float32).reshape(1, -1)
        if train and li >= 1:
            # matmul is linear, so the previous layer's 1/(1-p) dropout scale
            # can be folded into this layer's weights (bias unaffected).
            w = w * inv_keep
        ws.append(w)
        bs.append(b)

    output_size = ws[-1].shape[1]
    out_padded = _round_up(output_size, LANE)
    if out_padded != output_size:
        ws[-1] = jnp.pad(ws[-1], ((0, 0), (0, out_padded - output_size)))
        bs[-1] = jnp.pad(bs[-1], ((0, 0), (0, out_padded - output_size)),
                         constant_values=NEG_INF)

    ws = [w.astype(jnp.bfloat16) for w in ws]   # bf16 MXU operands
    return dict(ws=ws, bs=bs, output_size=output_size,
                out_padded=out_padded, train=train)


# --------------------------------------------------------------------------
# Wrapper
# --------------------------------------------------------------------------
def network_forward(x, prepared, *, rng=None, batch_tile=512,
                    return_padded=False):
    """Fused MLP forward.

    x: (batch, input_size) float32
    prepared: output of prepare_params(params, train=...)
    rng: PRNGKey for dropout masks (train mode only).
    Returns (batch, output_size) float32 log-probabilities, or the padded
    (padded_batch, 128) slab if return_padded=True (lane-dense, no slice).
    """
    ws, bs = prepared["ws"], prepared["bs"]
    train = prepared["train"]
    output_size, out_padded = prepared["output_size"], prepared["out_padded"]
    n_hidden = len(ws) - 1
    batch, in_features = x.shape

    # ---- batch tile selection ----------------------------------------------
    # Largest tile up to `batch_tile` rows, but keep >= 2 grid steps so the
    # "parallel" axis shards across v7x's two TensorCores (1 TC on v5e/v6e is
    # unaffected).  tm is always a multiple of 8 (sublane alignment).
    batch_tile = max(8, _round_up(batch_tile, 8))
    pad8 = _round_up(batch, 8)
    if pad8 <= batch_tile:
        tm = _round_up(-(-pad8 // 2), 8) if pad8 >= 16 else pad8
    else:
        tm = batch_tile
    padded_batch = _round_up(batch, tm)
    grid = (padded_batch // tm,)

    # x stays f32 in HBM; the kernel casts each tile to bf16 on the fly.
    x_p = x.astype(jnp.float32)
    if padded_batch != batch:
        x_p = jnp.pad(x_p, ((0, padded_batch - batch), (0, 0)))

    batch_map = lambda i: (i, 0)   # noqa: E731
    const_map = lambda i: (0, 0)   # noqa: E731

    inputs = [x_p]
    in_specs = [pl.BlockSpec((tm, in_features), batch_map)]

    if train:
        # Precomputed 0/1 keep-masks (host-side jax.random) -- portable to
        # interpret mode; scale is already folded into downstream weights.
        if rng is None:
            rng = jax.random.PRNGKey(0)
        hidden_sizes = [w.shape[1] for w in ws[:-1]]
        keys = jax.random.split(rng, n_hidden)
        for k, h in zip(keys, hidden_sizes):
            mask = jax.random.bernoulli(
                k, 1.0 - DROP_P, (padded_batch, h)).astype(jnp.bfloat16)
            inputs.append(mask)
            in_specs.append(pl.BlockSpec((tm, h), batch_map))

    for w, b in zip(ws, bs):
        inputs.append(w)
        inputs.append(b)
        in_specs.append(pl.BlockSpec(w.shape, const_map))  # VMEM-resident
        in_specs.append(pl.BlockSpec(b.shape, const_map))

    out_spec = pl.BlockSpec((tm, out_padded), batch_map)
    out_shape = jax.ShapeDtypeStruct((padded_batch, out_padded), jnp.float32)

    out = pl.pallas_call(
        _make_mlp_kernel(n_hidden, train),
        out_shape=out_shape,
        grid_spec=pl.GridSpec(grid=grid, in_specs=in_specs,
                              out_specs=out_spec),
        compiler_params=pltpu.CompilerParams(
            dimension_semantics=("parallel",),
            vmem_limit_bytes=32 * 1024 * 1024),   # big tiles stay portable (v5e)
    )(*inputs)

    if return_padded:
        return out
    return out[:batch, :output_size]


# --------------------------------------------------------------------------
# Pure-JAX reference (eval mode), mirroring the kernel's bf16 matmul inputs
# --------------------------------------------------------------------------
def reference_eval(x, params):
    h = x.astype(jnp.bfloat16)
    for w, b in params[:-1]:
        a = jnp.dot(h, w.astype(jnp.bfloat16),
                    preferred_element_type=jnp.float32) + b.reshape(1, -1)
        h = jnp.maximum(a, 0.0).astype(jnp.bfloat16)
    wo, bo = params[-1]
    logits = jnp.dot(h, wo.astype(jnp.bfloat16),
                     preferred_element_type=jnp.float32) + bo.reshape(1, -1)
    return jax.nn.log_softmax(logits, axis=1)


if __name__ == "__main__":
    # Shapes faithful to the reference script: input_size=1024, output_size=102,
    # two hidden layers; batch tiled over a parallel grid axis (>= 2 tiles).
    batch = 256
    input_size = 1024
    hidden_layers = [256, 128]
    output_size = 102

    key = jax.random.PRNGKey(0)
    key, kx = jax.random.split(key)
    x = jax.random.normal(kx, (batch, input_size), dtype=jnp.float32)
    params = init_params(key, input_size, hidden_layers, output_size)

    # Eval-mode forward (dropout is identity, deterministic).
    prep_eval = prepare_params(params, train=False)
    out = network_forward(x, prep_eval)
    out = jax.block_until_ready(out)
    assert out.shape == (batch, output_size)
    assert bool(jnp.all(jnp.isfinite(out)))
    assert bool(jnp.allclose(jnp.sum(jnp.exp(out), axis=1), 1.0, atol=1e-3))

    ref = reference_eval(x, params)
    assert bool(jnp.allclose(out, ref, atol=5e-3, rtol=5e-3))

    # Training-mode forward (inverted dropout via precomputed keep-masks);
    # still a valid log-softmax per row.
    prep_train = prepare_params(params, train=True)
    out_tr = network_forward(x, prep_train, rng=jax.random.PRNGKey(123))
    out_tr = jax.block_until_ready(out_tr)
    assert out_tr.shape == (batch, output_size)
    assert bool(jnp.all(jnp.isfinite(out_tr)))
    assert bool(jnp.allclose(jnp.sum(jnp.exp(out_tr), axis=1), 1.0, atol=1e-3))

    print("KERNEL_OK")
</pallas_src>

<mosaic_0001>
module attributes {stable_mosaic.version = 11 : i64} {
  func.func @kernel(%arg0: i32, %arg1: memref<128x1024xf32, #tpu.memory_space<vmem>>, %arg2: memref<1024x256xbf16, #tpu.memory_space<vmem>>, %arg3: memref<1x256xf32, #tpu.memory_space<vmem>>, %arg4: memref<256x128xbf16, #tpu.memory_space<vmem>>, %arg5: memref<1x128xf32, #tpu.memory_space<vmem>>, %arg6: memref<128x128xbf16, #tpu.memory_space<vmem>>, %arg7: memref<1x128xf32, #tpu.memory_space<vmem>>, %arg8: memref<128x128xf32, #tpu.memory_space<vmem>>) attributes {dimension_semantics = [#tpu.dimension_semantics<parallel>], iteration_bounds = array<i64: 2>, scalar_prefetch = 0 : i64, scratch_operands = 0 : i64, tpu.core_type = #tpu.core_type<tc>, window_params = [{transform_indices = @transform_0, window_bounds = array<i64: 128, 1024>}, {pipeline_mode = #tpu.pipeline_mode<synchronous>, transform_indices = @transform_1, window_bounds = array<i64: 1024, 256>}, {pipeline_mode = #tpu.pipeline_mode<synchronous>, transform_indices = @transform_2, window_bounds = array<i64: 1, 256>}, {pipeline_mode = #tpu.pipeline_mode<synchronous>, transform_indices = @transform_3, window_bounds = array<i64: 256, 128>}, {pipeline_mode = #tpu.pipeline_mode<synchronous>, transform_indices = @transform_4, window_bounds = array<i64: 1, 128>}, {pipeline_mode = #tpu.pipeline_mode<synchronous>, transform_indices = @transform_5, window_bounds = array<i64: 128, 128>}, {pipeline_mode = #tpu.pipeline_mode<synchronous>, transform_indices = @transform_6, window_bounds = array<i64: 1, 128>}, {transform_indices = @transform_7, window_bounds = array<i64: 128, 128>}]} {
    %c0 = arith.constant 0 : index
    %c0_0 = arith.constant 0 : index
    %0 = vector.load %arg1[%c0, %c0_0] : memref<128x1024xf32, #tpu.memory_space<vmem>>, vector<128x1024xf32>
    %1 = arith.truncf %0 : vector<128x1024xf32> to vector<128x1024xbf16>
    %c0_1 = arith.constant 0 : index
    %c0_2 = arith.constant 0 : index
    %2 = vector.load %arg2[%c0_1, %c0_2] : memref<1024x256xbf16, #tpu.memory_space<vmem>>, vector<1024x256xbf16>
    %cst = arith.constant dense<0.000000e+00> : vector<128x256xf32>
    %3 = tpu.matmul %1, %2, %cst {dimension_numbers = #tpu.dot_dimension_numbers<[1], [0], [0], [1], [0, 0, 1, 1], [], []>} : vector<128x1024xbf16>, vector<1024x256xbf16>, vector<128x256xf32> -> vector<128x256xf32>
    %c0_3 = arith.constant 0 : index
    %c0_4 = arith.constant 0 : index
    %4 = vector.load %arg3[%c0_3, %c0_4] : memref<1x256xf32, #tpu.memory_space<vmem>>, vector<1x256xf32>
    %5 = vector.broadcast %4 : vector<1x256xf32> to vector<128x256xf32>
    %6 = arith.addf %3, %5 : vector<128x256xf32>
    %cst_5 = arith.constant 0.000000e+00 : f32
    %7 = vector.broadcast %cst_5 : f32 to vector<128x256xf32>
    %8 = arith.maximumf %6, %7 : vector<128x256xf32>
    %9 = arith.truncf %8 : vector<128x256xf32> to vector<128x256xbf16>
    %c0_6 = arith.constant 0 : index
    %c0_7 = arith.constant 0 : index
    %10 = vector.load %arg4[%c0_6, %c0_7] : memref<256x128xbf16, #tpu.memory_space<vmem>>, vector<256x128xbf16>
    %cst_8 = arith.constant dense<0.000000e+00> : vector<128x128xf32>
    %11 = tpu.matmul %9, %10, %cst_8 {dimension_numbers = #tpu.dot_dimension_numbers<[1], [0], [0], [1], [0, 0, 1, 1], [], []>} : vector<128x256xbf16>, vector<256x128xbf16>, vector<128x128xf32> -> vector<128x128xf32>
    %c0_9 = arith.constant 0 : index
    %c0_10 = arith.constant 0 : index
    %12 = vector.load %arg5[%c0_9, %c0_10] : memref<1x128xf32, #tpu.memory_space<vmem>>, vector<1x128xf32>
    %13 = vector.broadcast %12 : vector<1x128xf32> to vector<128x128xf32>
    %14 = arith.addf %11, %13 : vector<128x128xf32>
    %cst_11 = arith.constant 0.000000e+00 : f32
    %15 = vector.broadcast %cst_11 : f32 to vector<128x128xf32>
    %16 = arith.maximumf %14, %15 : vector<128x128xf32>
    %17 = arith.truncf %16 : vector<128x128xf32> to vector<128x128xbf16>
    %c0_12 = arith.constant 0 : index
    %c0_13 = arith.constant 0 : index
    %18 = vector.load %arg6[%c0_12, %c0_13] : memref<128x128xbf16, #tpu.memory_space<vmem>>, vector<128x128xbf16>
    %cst_14 = arith.constant dense<0.000000e+00> : vector<128x128xf32>
    %19 = tpu.matmul %17, %18, %cst_14 {dimension_numbers = #tpu.dot_dimension_numbers<[1], [0], [0], [1], [0, 0, 1, 1], [], []>} : vector<128x128xbf16>, vector<128x128xbf16>, vector<128x128xf32> -> vector<128x128xf32>
    %c0_15 = arith.constant 0 : index
    %c0_16 = arith.constant 0 : index
    %20 = vector.load %arg7[%c0_15, %c0_16] : memref<1x128xf32, #tpu.memory_space<vmem>>, vector<1x128xf32>
    %21 = vector.broadcast %20 : vector<1x128xf32> to vector<128x128xf32>
    %22 = arith.addf %19, %21 : vector<128x128xf32>
    %cst_17 = arith.constant dense<0xFF800000> : vector<128xf32>
    %23 = vector.multi_reduction <maximumf>, %22, %cst_17 [1] : vector<128x128xf32> to vector<128xf32>
    %24 = vector.shape_cast %23 : vector<128xf32> to vector<128x1xf32>
    %25 = vector.broadcast %24 : vector<128x1xf32> to vector<128x128xf32>
    %26 = arith.subf %22, %25 : vector<128x128xf32>
    %27 = math.exp %26 : vector<128x128xf32>
    %cst_18 = arith.constant dense<0.000000e+00> : vector<128xf32>
    %28 = vector.multi_reduction <add>, %27, %cst_18 [1] : vector<128x128xf32> to vector<128xf32>
    %29 = vector.shape_cast %28 : vector<128xf32> to vector<128x1xf32>
    %30 = math.log %29 : vector<128x1xf32>
    %31 = arith.addf %24, %30 : vector<128x1xf32>
    %32 = vector.broadcast %31 : vector<128x1xf32> to vector<128x128xf32>
    %33 = arith.subf %22, %32 : vector<128x128xf32>
    %c0_19 = arith.constant 0 : index
    %c0_20 = arith.constant 0 : index
    %34 = vector.load %arg8[%c0_19, %c0_20] : memref<128x128xf32, #tpu.memory_space<vmem>>, vector<128x128xf32>
    tpu.vector_store %arg8[%c0_19, %c0_20], %33 {strides = array<i32>} : memref<128x128xf32, #tpu.memory_space<vmem>>, vector<128x128xf32>,
    return
  }
  func.func @transform_0(%arg0: i32) -> (i32, i32) {
    %c0_i32 = arith.constant 0 : i32
    %c0_i32_0 = arith.constant 0 : i32
    return %arg0, %c0_i32 : i32, i32
  }
  func.func @transform_1(%arg0: i32) -> (i32, i32) {
    %c0_i32 = arith.constant 0 : i32
    %c0_i32_0 = arith.constant 0 : i32
    %c0_i32_1 = arith.constant 0 : i32
    return %c0_i32, %c0_i32_0 : i32, i32
  }
  func.func @transform_2(%arg0: i32) -> (i32, i32) {
    %c0_i32 = arith.constant 0 : i32
    %c0_i32_0 = arith.constant 0 : i32
    %c0_i32_1 = arith.constant 0 : i32
    return %c0_i32, %c0_i32_0 : i32, i32
  }
  func.func @transform_3(%arg0: i32) -> (i32, i32) {
    %c0_i32 = arith.constant 0 : i32
    %c0_i32_0 = arith.constant 0 : i32
    %c0_i32_1 = arith.constant 0 : i32
    return %c0_i32, %c0_i32_0 : i32, i32
  }
  func.func @transform_4(%arg0: i32) -> (i32, i32) {
    %c0_i32 = arith.constant 0 : i32
    %c0_i32_0 = arith.constant 0 : i32
    %c0_i32_1 = arith.constant 0 : i32
    return %c0_i32, %c0_i32_0 : i32, i32
  }
  func.func @transform_5(%arg0: i32) -> (i32, i32) {
    %c0_i32 = arith.constant 0 : i32
    %c0_i32_0 = arith.constant 0 : i32
    %c0_i32_1 = arith.constant 0 : i32
    return %c0_i32, %c0_i32_0 : i32, i32
  }
  func.func @transform_6(%arg0: i32) -> (i32, i32) {
    %c0_i32 = arith.constant 0 : i32
    %c0_i32_0 = arith.constant 0 : i32
    %c0_i32_1 = arith.constant 0 : i32
    return %c0_i32, %c0_i32_0 : i32, i32
  }
  func.func @transform_7(%arg0: i32) -> (i32, i32) {
    %c0_i32 = arith.constant 0 : i32
    %c0_i32_0 = arith.constant 0 : i32
    return %arg0, %c0_i32 : i32, i32
  }
}

</mosaic_0001>

<llo_original>
// kernel: tpu_custom_call.1
$region0: #{tpu_custom_call.1}
  #allocation0 [shape = 'u32[]', space=smem, size = 0x4, offset = 0x4, fixed_abs, tag = 'smem constant byte address 0x4 - core index']
  #allocation1 [shape = 'u32[144,128]{1,0:T(1,128)}', space=vmem, size = 0x12000, scoped, tag = 'internal scratch']
  %s0 = inlined_call_operand.hbm [shape: f32[256,1024], index: 0, kind: input, shape index: {}]
  %s1 = inlined_call_operand.hbm [shape: bf16[1024,256], index: 1, kind: input, shape index: {}]
  %s2 = inlined_call_operand.vmem [shape: f32[1,256], index: 2, kind: input, shape index: {}]
  %s3 = inlined_call_operand.hbm [shape: bf16[256,128], index: 3, kind: input, shape index: {}]
  %s4 = inlined_call_operand.vmem [shape: f32[1,128], index: 4, kind: input, shape index: {}]
  %s5 = inlined_call_operand.hbm [shape: bf16[128,128], index: 5, kind: input, shape index: {}]
  %s6 = inlined_call_operand.vmem [shape: f32[1,128], index: 6, kind: input, shape index: {}]
  %s7 = inlined_call_operand.hbm [shape: f32[256,128], index: 7, kind: output, shape index: {}]
  %s8 = sld [smem:[#allocation0]]
  $region77: #{tpu_custom_call.1} parent=0
    _
  %s10 = ssub.s32 1, %s8
  %s11 = scalar_select 0, %s10, %s8
  $region1: #{tpu_custom_call.1} parent=0
    #allocation2 [shape = 'u8[1048576]{0}', space=vmem, size = 0x100000, scoped, tag = 'input window, operand 0']
    #allocation3 [shape = 's32[2]{0}', space=sflag, size = 0x8, scoped, tag = 'scoped memory for tpu_custom_call.1']
    #allocation4 [shape = 's32[2]{0}', space=sflag, size = 0x8, scoped, tag = 'scoped memory for tpu_custom_call.1']
    #allocation5 [shape = 'u8[524288]{0}', space=vmem, size = 0x80000, scoped, tag = 'input window, operand 1, single buffered']
    #allocation6 [shape = 's32[1]{0}', space=sflag, size = 0x4, scoped, tag = 'scoped memory for tpu_custom_call.1']
    #allocation7 [shape = 'u8[65536]{0}', space=vmem, size = 0x10000, scoped, tag = 'input window, operand 3, single buffered']
    #allocation8 [shape = 'u8[32768]{0}', space=vmem, size = 0x8000, scoped, tag = 'input window, operand 5, single buffered']
    #allocation9 [shape = 's32[1]{0}', space=sflag, size = 0x4, scoped, tag = 'scoped memory for tpu_custom_call.1']
    #allocation10 [shape = 'u8[131072]{0}', space=vmem, size = 0x20000, scoped, tag = 'output window, operand 0']
    %12 = vsyncpa [#allocation3], 0
    %s13 = scalar_lea.sflag [#allocation3], 1
    %14 = vsyncpa %s13, 0
    %15 = vsyncpa [#allocation6], 0
    %16 = vsyncpa [#allocation9], 0
    %17 = vsyncpa [#allocation4], 0
    %s18 = scalar_lea.sflag [#allocation4], 1
    %19 = vsyncpa %s18, 0
    loop: start=0, step=1, limit=4
    $region2: #{tpu_custom_call.1} parent=1 // loop_pre_header
      _
    $region3: #{tpu_custom_call.1} parent=1 // loop_header
      %s21 = sphi 0, %s25
      %p22 = scmp.ge.s32.totalorder %s21, 4
      %s31 = sphi 0, %s33
      %s34 = sphi 0, %s31
      %s35 = sphi 0, %s34
      %s51 = sphi 0, %s35
      %s55 = sphi 0, %s55
      %s57 = sphi 0, %s55
      %s58 = sphi 0, %s57
      %s72 = sphi 0, %s58
      %s76 = sphi 0, %s76
      %s78 = sphi 0, %s76
      %s79 = sphi 0, %s78
      %s93 = sphi 0, %s79
      %s97 = sphi 0, %s97
      %s99 = sphi 0, %s97
      %s100 = sphi 0, %s99
      %s114 = sphi 0, %s100
      %s118 = sphi 0, %s118
      %s120 = sphi 0, %s118
      %s121 = sphi 0, %s120
      %s135 = sphi 0, %s121
      %s139 = sphi 0, %s139
      %s141 = sphi 0, %s139
      %s142 = sphi 0, %s141
      %s156 = sphi 0, %s142
      %s160 = sphi 0, %s160
      %s162 = sphi 0, %s160
      %s163 = sphi 0, %s162
      %s177 = sphi 0, %s163
      %s183 = sphi 0, %s185
      %s186 = sphi 0, %s183
      %s187 = sphi 0, %s186
      %s203 = sphi 0, %s187
    $region4: #{tpu_custom_call.1} parent=1 // loop_header_branch
      %24 = sbr.rel (%p22) target = $region8
    $region5: #{tpu_custom_call.1} parent=1 // loop_body
      %s26 = ssub.s32 %s21, 1
      %s27 = ssub.s32 %s21, 2
      %s28 = sadd.s32 %s21, 1
      %s29 = ssub.s32 %s21, %s28
      %p30 = scmp.eq.s32.totalorder %s29, 0
      %s32 = sadd.s32 %s31, 1
      %s33 = scalar_select %p30, %s31, %s32
      %p36 = pneg %p30
      %p37 = scmp.eq.s32.totalorder %s21, 1
      %p38 = por %p36, %p37
      %p39 = scmp.ne.s32.totalorder %s31, %s34
      %p40 = scmp.eq.s32.totalorder %s21, 0
      %p41 = por %p39, %p40
      %p42 = scmp.ne.s32.totalorder %s31, %s34
      %p43 = scmp.eq.s32.totalorder %s26, 1
      %p44 = por %p42, %p43
      %p45 = scmp.ne.s32.totalorder %s34, %s35
      %p46 = scmp.eq.s32.totalorder %s26, 0
      %p47 = por %p45, %p46
      %p48 = scmp.ne.s32.totalorder %s34, %s35
      %p49 = scmp.eq.s32.totalorder %s27, 1
      %p50 = por %p48, %p49
      %p52 = scmp.ne.s32.totalorder %s35, %s51
      %p53 = scmp.eq.s32.totalorder %s27, 0
      %p54 = por %p52, %p53
      %s56 = sadd.s32 %s55, 1
      %p59 = scmp.eq.s32.totalorder %s21, 1
      %p60 = scmp.ne.s32.totalorder %s55, %s57
      %p61 = scmp.eq.s32.totalorder %s21, 0
      %p62 = por %p60, %p61
      %p63 = scmp.ne.s32.totalorder %s55, %s57
      %p64 = scmp.eq.s32.totalorder %s26, 1
      %p65 = por %p63, %p64
      %p66 = scmp.ne.s32.totalorder %s57, %s58
      %p67 = scmp.eq.s32.totalorder %s26, 0
      %p68 = por %p66, %p67
      %p69 = scmp.ne.s32.totalorder %s57, %s58
      %p70 = scmp.eq.s32.totalorder %s27, 1
      %p71 = por %p69, %p70
      %p73 = scmp.ne.s32.totalorder %s58, %s72
      %p74 = scmp.eq.s32.totalorder %s27, 0
      %p75 = por %p73, %p74
      %s77 = sadd.s32 %s76, 1
      %p80 = scmp.eq.s32.totalorder %s21, 1
      %p81 = scmp.ne.s32.totalorder %s76, %s78
      %p82 = scmp.eq.s32.totalorder %s21, 0
      %p83 = por %p81, %p82
      %p84 = scmp.ne.s32.totalorder %s76, %s78
      %p85 = scmp.eq.s32.totalorder %s26, 1
      %p86 = por %p84, %p85
      %p87 = scmp.ne.s32.totalorder %s78, %s79
      %p88 = scmp.eq.s32.totalorder %s26, 0
      %p89 = por %p87, %p88
      %p90 = scmp.ne.s32.totalorder %s78, %s79
      %p91 = scmp.eq.s32.totalorder %s27, 1
      %p92 = por %p90, %p91
      %p94 = scmp.ne.s32.totalorder %s79, %s93
      %p95 = scmp.eq.s32.totalorder %s27, 0
      %p96 = por %p94, %p95
      %s98 = sadd.s32 %s97, 1
      %p101 = scmp.eq.s32.totalorder %s21, 1
      %p102 = scmp.ne.s32.totalorder %s97, %s99
      %p103 = scmp.eq.s32.totalorder %s21, 0
      %p104 = por %p102, %p103
      %p105 = scmp.ne.s32.totalorder %s97, %s99
      %p106 = scmp.eq.s32.totalorder %s26, 1
      %p107 = por %p105, %p106
      %p108 = scmp.ne.s32.totalorder %s99, %s100
      %p109 = scmp.eq.s32.totalorder %s26, 0
      %p110 = por %p108, %p109
      %p111 = scmp.ne.s32.totalorder %s99, %s100
      %p112 = scmp.eq.s32.totalorder %s27, 1
      %p113 = por %p111, %p112
      %p115 = scmp.ne.s32.totalorder %s100, %s114
      %p116 = scmp.eq.s32.totalorder %s27, 0
      %p117 = por %p115, %p116
      %s119 = sadd.s32 %s118, 1
      %p122 = scmp.eq.s32.totalorder %s21, 1
      %p123 = scmp.ne.s32.totalorder %s118, %s120
      %p124 = scmp.eq.s32.totalorder %s21, 0
      %p125 = por %p123, %p124
      %p126 = scmp.ne.s32.totalorder %s118, %s120
      %p127 = scmp.eq.s32.totalorder %s26, 1
      %p128 = por %p126, %p127
      %p129 = scmp.ne.s32.totalorder %s120, %s121
      %p130 = scmp.eq.s32.totalorder %s26, 0
      %p131 = por %p129, %p130
      %p132 = scmp.ne.s32.totalorder %s120, %s121
      %p133 = scmp.eq.s32.totalorder %s27, 1
      %p134 = por %p132, %p133
      %p136 = scmp.ne.s32.totalorder %s121, %s135
      %p137 = scmp.eq.s32.totalorder %s27, 0
      %p138 = por %p136, %p137
      %s140 = sadd.s32 %s139, 1
      %p143 = scmp.eq.s32.totalorder %s21, 1
      %p144 = scmp.ne.s32.totalorder %s139, %s141
      %p145 = scmp.eq.s32.totalorder %s21, 0
      %p146 = por %p144, %p145
      %p147 = scmp.ne.s32.totalorder %s139, %s141
      %p148 = scmp.eq.s32.totalorder %s26, 1
      %p149 = por %p147, %p148
      %p150 = scmp.ne.s32.totalorder %s141, %s142
      %p151 = scmp.eq.s32.totalorder %s26, 0
      %p152 = por %p150, %p151
      %p153 = scmp.ne.s32.totalorder %s141, %s142
      %p154 = scmp.eq.s32.totalorder %s27, 1
      %p155 = por %p153, %p154
      %p157 = scmp.ne.s32.totalorder %s142, %s156
      %p158 = scmp.eq.s32.totalorder %s27, 0
      %p159 = por %p157, %p158
      %s161 = sadd.s32 %s160, 1
      %p164 = scmp.eq.s32.totalorder %s21, 1
      %p165 = scmp.ne.s32.totalorder %s160, %s162
      %p166 = scmp.eq.s32.totalorder %s21, 0
      %p167 = por %p165, %p166
      %p168 = scmp.ne.s32.totalorder %s160, %s162
      %p169 = scmp.eq.s32.totalorder %s26, 1
      %p170 = por %p168, %p169
      %p171 = scmp.ne.s32.totalorder %s162, %s163
      %p172 = scmp.eq.s32.totalorder %s26, 0
      %p173 = por %p171, %p172
      %p174 = scmp.ne.s32.totalorder %s162, %s163
      %p175 = scmp.eq.s32.totalorder %s27, 1
      %p176 = por %p174, %p175
      %p178 = scmp.ne.s32.totalorder %s163, %s177
      %p179 = scmp.eq.s32.totalorder %s27, 0
      %p180 = por %p178, %p179
      %s181 = ssub.s32 %s21, %s28
      %p182 = scmp.eq.s32.totalorder %s181, 0
      %s184 = sadd.s32 %s183, 1
      %s185 = scalar_select %p182, %s183, %s184
      %p188 = pneg %p182
      %p189 = scmp.eq.s32.totalorder %s21, 1
      %p190 = por %p188, %p189
      %p191 = scmp.ne.s32.totalorder %s183, %s186
      %p192 = scmp.eq.s32.totalorder %s21, 0
      %p193 = por %p191, %p192
      %p194 = scmp.ne.s32.totalorder %s183, %s186
      %p195 = scmp.eq.s32.totalorder %s26, 1
      %p196 = por %p194, %p195
      %p197 = scmp.ne.s32.totalorder %s186, %s187
      %p198 = scmp.eq.s32.totalorder %s26, 0
      %p199 = por %p197, %p198
      %p200 = scmp.ne.s32.totalorder %s186, %s187
      %p201 = scmp.eq.s32.totalorder %s27, 1
      %p202 = por %p200, %p201
      %p204 = scmp.ne.s32.totalorder %s187, %s203
      %p205 = scmp.eq.s32.totalorder %s27, 0
      %p206 = por %p204, %p205
      %p207 = scmp.le.s32.totalorder 1, %s21
      %p208 = scmp.lt.s32.totalorder %s21, 3
      %p209 = pnand %p207, %p208
      %p210 = pneg %p209
      // Predicated region
      $region9: #{tpu_custom_call.1} parent=5 // pred_check
        _
      $region10: #{tpu_custom_call.1} parent=5 // pred_check_branch
        %212 = sbr.rel (%p209) target = $region12
      $region11: #{tpu_custom_call.1} parent=5 // pred_region
        %s213 = ssub.s32 %s21, 1
        // Predicated region
        $region13: #{tpu_custom_call.1} parent=11 // pred_check
          %p214 = pneg %p68
        $region14: #{tpu_custom_call.1} parent=11 // pred_check_branch
          %216 = sbr.rel (%p214) target = $region16
        $region15: #{tpu_custom_call.1} parent=11 // pred_region
          %s218 = ssub.s32 16384, 16384
          %219 = vsyncadd [#allocation6], %s218
          %s220 = sshll.u32 [#allocation5], 4
          %s221 = int_to_ptr.vmem [resolvable:$true] %s220
          %226 = dma.hbm_to_vmem [thread:$0]  %s1, 16384, %s221, [#allocation6], 128, 128, 8
        $region16: #{tpu_custom_call.1} parent=11 // pred_fallthru
          _
        // Predicated region
        $region17: #{tpu_custom_call.1} parent=11 // pred_check
          %p227 = pneg %p89
        $region18: #{tpu_custom_call.1} parent=11 // pred_check_branch
          %229 = sbr.rel (%p227) target = $region20
        $region19: #{tpu_custom_call.1} parent=11 // pred_region
          _
        $region20: #{tpu_custom_call.1} parent=11 // pred_fallthru
          _
        // Predicated region
        $region21: #{tpu_custom_call.1} parent=11 // pred_check
          %p230 = pneg %p110
        $region22: #{tpu_custom_call.1} parent=11 // pred_check_branch
          %232 = sbr.rel (%p230) target = $region24
        $region23: #{tpu_custom_call.1} parent=11 // pred_region
          %s234 = ssub.s32 2048, 2048
          %235 = vsyncadd [#allocation6], %s234
          %s236 = sshll.u32 [#allocation7], 4
          %s237 = int_to_ptr.vmem [resolvable:$true] %s236
          %242 = dma.hbm_to_vmem [thread:$0]  %s3, 2048, %s237, [#allocation6], 64, 64, 4
        $region24: #{tpu_custom_call.1} parent=11 // pred_fallthru
          _
        // Predicated region
        $region25: #{tpu_custom_call.1} parent=11 // pred_check
          %p243 = pneg %p131
        $region26: #{tpu_custom_call.1} parent=11 // pred_check_branch
          %245 = sbr.rel (%p243) target = $region28
        $region27: #{tpu_custom_call.1} parent=11 // pred_region
          _
        $region28: #{tpu_custom_call.1} parent=11 // pred_fallthru
          _
        // Predicated region
        $region29: #{tpu_custom_call.1} parent=11 // pred_check
          %p246 = pneg %p152
        $region30: #{tpu_custom_call.1} parent=11 // pred_check_branch
          %248 = sbr.rel (%p246) target = $region32
        $region31: #{tpu_custom_call.1} parent=11 // pred_region
          %s250 = ssub.s32 1024, 1024
          %251 = vsyncadd [#allocation9], %s250
          %s252 = sshll.u32 [#allocation8], 4
          %s253 = int_to_ptr.vmem [resolvable:$true] %s252
          %258 = dma.hbm_to_vmem [thread:$0]  %s5, 1024, %s253, [#allocation9], 64, 64, 4
        $region32: #{tpu_custom_call.1} parent=11 // pred_fallthru
          _
        // Predicated region
        $region33: #{tpu_custom_call.1} parent=11 // pred_check
          %p259 = pneg %p173
        $region34: #{tpu_custom_call.1} parent=11 // pred_check_branch
          %261 = sbr.rel (%p259) target = $region36
        $region35: #{tpu_custom_call.1} parent=11 // pred_region
          _
        $region36: #{tpu_custom_call.1} parent=11 // pred_fallthru
          _
      $region12: #{tpu_custom_call.1} parent=5 // pred_fallthru
        _
      %p262 = scmp.lt.s32.totalorder %s21, 2
      // Predicated region
      $region37: #{tpu_custom_call.1} parent=5 // pred_check
        %p263 = pneg %p262
      $region38: #{tpu_custom_call.1} parent=5 // pred_check_branch
        %265 = sbr.rel (%p263) target = $region40
      $region39: #{tpu_custom_call.1} parent=5 // pred_region
        // Predicated region
        $region41: #{tpu_custom_call.1} parent=39 // pred_check
          %p266 = pneg %p41
        $region42: #{tpu_custom_call.1} parent=39 // pred_check_branch
          %268 = sbr.rel (%p266) target = $region44
        $region43: #{tpu_custom_call.1} parent=39 // pred_region
          %s269 = sand.u32 %s31, 1
          %s270 = scalar_lea.sflag [#allocation3], %s269
          %s271 = sand.u32 %s31, 1
          %s272 = smul.addr %s271, 1024
          %s273 = scalar_lea.vmem [#allocation2], %s272
          %s274 = smul.u32 16, %s21
          %s276 = ssub.s32 16384, 16384
          %277 = vsyncadd %s270, %s276
          %s278 = smul.addr %s274, 8
          %s279 = smul.addr %s278, 128
          %s280 = scalar_lea.hbm %s0, %s279
          %s281 = sshll.u32 %s273, 4
          %s282 = int_to_ptr.vmem [resolvable:$true] %s281
          %287 = dma.hbm_to_vmem [thread:$0]  %s280, 16384, %s282, %s270, 1024, 1024, 64
        $region44: #{tpu_custom_call.1} parent=39 // pred_fallthru
          _
      $region40: #{tpu_custom_call.1} parent=5 // pred_fallthru
        _
      %p288 = scmp.le.s32.totalorder 1, %s21
      %p289 = scmp.lt.s32.totalorder %s21, 3
      %p290 = pnand %p288, %p289
      %p291 = pneg %p290
      // Predicated region
      $region45: #{tpu_custom_call.1} parent=5 // pred_check
        _
      $region46: #{tpu_custom_call.1} parent=5 // pred_check_branch
        %293 = sbr.rel (%p290) target = $region48
      $region47: #{tpu_custom_call.1} parent=5 // pred_region
        %s294 = ssub.s32 %s21, 1
        %s295 = sand.u32 %s34, 1
        %s296 = scalar_lea.sflag [#allocation3], %s295
        %s297 = sand.u32 %s34, 1
        %s298 = smul.addr %s297, 1024
        %s299 = scalar_lea.vmem [#allocation2], %s298
        // Predicated region
        $region49: #{tpu_custom_call.1} parent=47 // pred_check
          %p300 = pneg %p47
        $region50: #{tpu_custom_call.1} parent=47 // pred_check_branch
          %302 = sbr.rel (%p300) target = $region52
        $region51: #{tpu_custom_call.1} parent=47 // pred_region
          %303 = dma.done %s296, 16384
        $region52: #{tpu_custom_call.1} parent=47 // pred_fallthru
          _
        // Predicated region
        $region53: #{tpu_custom_call.1} parent=47 // pred_check
          %p304 = pneg %p68
        $region54: #{tpu_custom_call.1} parent=47 // pred_check_branch
          %306 = sbr.rel (%p304) target = $region56
        $region55: #{tpu_custom_call.1} parent=47 // pred_region
          %307 = dma.done [#allocation6], 16384
        $region56: #{tpu_custom_call.1} parent=47 // pred_fallthru
          _
        // Predicated region
        $region57: #{tpu_custom_call.1} parent=47 // pred_check
          %p308 = pneg %p110
        $region58: #{tpu_custom_call.1} parent=47 // pred_check_branch
          %310 = sbr.rel (%p308) target = $region60
        $region59: #{tpu_custom_call.1} parent=47 // pred_region
          %311 = dma.done [#allocation6], 2048
        $region60: #{tpu_custom_call.1} parent=47 // pred_fallthru
          _
        // Predicated region
        $region61: #{tpu_custom_call.1} parent=47 // pred_check
          %p312 = pneg %p152
        $region62: #{tpu_custom_call.1} parent=47 // pred_check_branch
          %314 = sbr.rel (%p312) target = $region64
        $region63: #{tpu_custom_call.1} parent=47 // pred_region
          %315 = dma.done [#allocation9], 1024
        $region64: #{tpu_custom_call.1} parent=47 // pred_fallthru
          _
        %s316 = sand.u32 %s34, 1
        %s317 = scalar_lea.sflag [#allocation3], %s316
        %s318 = sand.u32 %s34, 1
        %s319 = smul.addr %s318, 1024
        %s320 = scalar_lea.vmem [#allocation2], %s319
        %p321 = pneg %p47
        %p322 = pneg %p44
        %p323 = pneg %p68
        %p324 = pneg %p65
        %p325 = pneg %p89
        %p326 = pneg %p86
        %p327 = pneg %p110
        %p328 = pneg %p107
        %p329 = pneg %p131
        %p330 = pneg %p128
        %p331 = pneg %p152
        %p332 = pneg %p149
        %p333 = pneg %p173
        %p334 = pneg %p170
        %p335 = pneg %p199
        %p336 = pneg %p196
        %s337 = sand.u32 %s186, 1
        %s338 = scalar_lea.sflag [#allocation4], %s337
        %s339 = sand.u32 %s186, 1
        %s340 = smul.addr %s339, 128
        %s341 = scalar_lea.vmem [#allocation10], %s340
        %s342 = smul.u32 16, %s26
        %s343 = smul.u32 16, %s26
        %v345 = vld [vmem:[%s299] sm:$0xff]
        %v346 = vld [vmem:[%s299 + $0x8] sm:$0xff]
        %v347 = vld [vmem:[%s299 + $0x10] sm:$0xff]
        %v348 = vld [vmem:[%s299 + $0x18] sm:$0xff]
        %v349 = vld [vmem:[%s299 + $0x20] sm:$0xff]
        %v350 = vld [vmem:[%s299 + $0x28] sm:$0xff]
        %v351 = vld [vmem:[%s299 + $0x30] sm:$0xff]
        %v352 = vld [vmem:[%s299 + $0x38] sm:$0xff]
        %v353 = vld [vmem:[%s299 + $0x40] sm:$0xff]
        %v354 = vld [vmem:[%s299 + $0x48] sm:$0xff]
        %v355 = vld [vmem:[%s299 + $0x50] sm:$0xff]
        %v356 = vld [vmem:[%s299 + $0x58] sm:$0xff]
        %v357 = vld [vmem:[%s299 + $0x60] sm:$0xff]
        %v358 = vld [vmem:[%s299 + $0x68] sm:$0xff]
        %v359 = vld [vmem:[%s299 + $0x70] sm:$0xff]
        %v360 = vld [vmem:[%s299 + $0x78] sm:$0xff]
        %v361 = vld [vmem:[%s299 + $0x80] sm:$0xff]
        %v362 = vld [vmem:[%s299 + $0x88] sm:$0xff]
        %v363 = vld [vmem:[%s299 + $0x90] sm:$0xff]
        %v364 = vld [vmem:[%s299 + $0x98] sm:$0xff]
        %v365 = vld [vmem:[%s299 + $0xa0] sm:$0xff]
        %v366 = vld [vmem:[%s299 + $0xa8] sm:$0xff]
        %v367 = vld [vmem:[%s299 + $0xb0] sm:$0xff]
        %v368 = vld [vmem:[%s299 + $0xb8] sm:$0xff]
        %v369 = vld [vmem:[%s299 + $0xc0] sm:$0xff]
        %v370 = vld [vmem:[%s299 + $0xc8] sm:$0xff]
        %v371 = vld [vmem:[%s299 + $0xd0] sm:$0xff]
        %v372 = vld [vmem:[%s299 + $0xd8] sm:$0xff]
        %v373 = vld [vmem:[%s299 + $0xe0] sm:$0xff]
        %v374 = vld [vmem:[%s299 + $0xe8] sm:$0xff]
        %v375 = vld [vmem:[%s299 + $0xf0] sm:$0xff]
        %v376 = vld [vmem:[%s299 + $0xf8] sm:$0xff]
        %v377 = vld [vmem:[%s299 + $0x100] sm:$0xff]
        %v378 = vld [vmem:[%s299 + $0x108] sm:$0xff]
        %v379 = vld [vmem:[%s299 + $0x110] sm:$0xff]
        %v380 = vld [vmem:[%s299 + $0x118] sm:$0xff]
        %v381 = vld [vmem:[%s299 + $0x120] sm:$0xff]
        %v382 = vld [vmem:[%s299 + $0x128] sm:$0xff]
        %v383 = vld [vmem:[%s299 + $0x130] sm:$0xff]
        %v384 = vld [vmem:[%s299 + $0x138] sm:$0xff]
        %v385 = vld [vmem:[%s299 + $0x140] sm:$0xff]
        %v386 = vld [vmem:[%s299 + $0x148] sm:$0xff]
        %v387 = vld [vmem:[%s299 + $0x150] sm:$0xff]
        %v388 = vld [vmem:[%s299 + $0x158] sm:$0xff]
        %v389 = vld [vmem:[%s299 + $0x160] sm:$0xff]
        %v390 = vld [vmem:[%s299 + $0x168] sm:$0xff]
        %v391 = vld [vmem:[%s299 + $0x170] sm:$0xff]
        %v392 = vld [vmem:[%s299 + $0x178] sm:$0xff]
        %v393 = vld [vmem:[%s299 + $0x180] sm:$0xff]
        %v394 = vld [vmem:[%s299 + $0x188] sm:$0xff]
        %v395 = vld [vmem:[%s299 + $0x190] sm:$0xff]
        %v396 = vld [vmem:[%s299 + $0x198] sm:$0xff]
        %v397 = vld [vmem:[%s299 + $0x1a0] sm:$0xff]
        %v398 = vld [vmem:[%s299 + $0x1a8] sm:$0xff]
        %v399 = vld [vmem:[%s299 + $0x1b0] sm:$0xff]
        %v400 = vld [vmem:[%s299 + $0x1b8] sm:$0xff]
        %v401 = vld [vmem:[%s299 + $0x1c0] sm:$0xff]
        %v402 = vld [vmem:[%s299 + $0x1c8] sm:$0xff]
        %v403 = vld [vmem:[%s299 + $0x1d0] sm:$0xff]
        %v404 = vld [vmem:[%s299 + $0x1d8] sm:$0xff]
        %v405 = vld [vmem:[%s299 + $0x1e0] sm:$0xff]
        %v406 = vld [vmem:[%s299 + $0x1e8] sm:$0xff]
        %v407 = vld [vmem:[%s299 + $0x1f0] sm:$0xff]
        %v408 = vld [vmem:[%s299 + $0x1f8] sm:$0xff]
        %v409 = vld [vmem:[%s299 + $0x200] sm:$0xff]
        %v410 = vld [vmem:[%s299 + $0x208] sm:$0xff]
        %v411 = vld [vmem:[%s299 + $0x210] sm:$0xff]
        %v412 = vld [vmem:[%s299 + $0x218] sm:$0xff]
        %v413 = vld [vmem:[%s299 + $0x220] sm:$0xff]
        %v414 = vld [vmem:[%s299 + $0x228] sm:$0xff]
        %v415 = vld [vmem:[%s299 + $0x230] sm:$0xff]
        %v416 = vld [vmem:[%s299 + $0x238] sm:$0xff]
        %v417 = vld [vmem:[%s299 + $0x240] sm:$0xff]
        %v418 = vld [vmem:[%s299 + $0x248] sm:$0xff]
        %v419 = vld [vmem:[%s299 + $0x250] sm:$0xff]
        %v420 = vld [vmem:[%s299 + $0x258] sm:$0xff]
        %v421 = vld [vmem:[%s299 + $0x260] sm:$0xff]
        %v422 = vld [vmem:[%s299 + $0x268] sm:$0xff]
        %v423 = vld [vmem:[%s299 + $0x270] sm:$0xff]
        %v424 = vld [vmem:[%s299 + $0x278] sm:$0xff]
        %v425 = vld [vmem:[%s299 + $0x280] sm:$0xff]
        %v426 = vld [vmem:[%s299 + $0x288] sm:$0xff]
        %v427 = vld [vmem:[%s299 + $0x290] sm:$0xff]
        %v428 = vld [vmem:[%s299 + $0x298] sm:$0xff]
        %v429 = vld [vmem:[%s299 + $0x2a0] sm:$0xff]
        %v430 = vld [vmem:[%s299 + $0x2a8] sm:$0xff]
        %v431 = vld [vmem:[%s299 + $0x2b0] sm:$0xff]
        %v432 = vld [vmem:[%s299 + $0x2b8] sm:$0xff]
        %v433 = vld [vmem:[%s299 + $0x2c0] sm:$0xff]
        %v434 = vld [vmem:[%s299 + $0x2c8] sm:$0xff]
        %v435 = vld [vmem:[%s299 + $0x2d0] sm:$0xff]
        %v436 = vld [vmem:[%s299 + $0x2d8] sm:$0xff]
        %v437 = vld [vmem:[%s299 + $0x2e0] sm:$0xff]
        %v438 = vld [vmem:[%s299 + $0x2e8] sm:$0xff]
        %v439 = vld [vmem:[%s299 + $0x2f0] sm:$0xff]
        %v440 = vld [vmem:[%s299 + $0x2f8] sm:$0xff]
        %v441 = vld [vmem:[%s299 + $0x300] sm:$0xff]
        %v442 = vld [vmem:[%s299 + $0x308] sm:$0xff]
        %v443 = vld [vmem:[%s299 + $0x310] sm:$0xff]
        %v444 = vld [vmem:[%s299 + $0x318] sm:$0xff]
        %v445 = vld [vmem:[%s299 + $0x320] sm:$0xff]
        %v446 = vld [vmem:[%s299 + $0x328] sm:$0xff]
        %v447 = vld [vmem:[%s299 + $0x330] sm:$0xff]
        %v448 = vld [vmem:[%s299 + $0x338] sm:$0xff]
        %v449 = vld [vmem:[%s299 + $0x340] sm:$0xff]
        %v450 = vld [vmem:[%s299 + $0x348] sm:$0xff]
        %v451 = vld [vmem:[%s299 + $0x350] sm:$0xff]
        %v452 = vld [vmem:[%s299 + $0x358] sm:$0xff]
        %v453 = vld [vmem:[%s299 + $0x360] sm:$0xff]
        %v454 = vld [vmem:[%s299 + $0x368] sm:$0xff]
        %v455 = vld [vmem:[%s299 + $0x370] sm:$0xff]
        %v456 = vld [vmem:[%s299 + $0x378] sm:$0xff]
        %v457 = vld [vmem:[%s299 + $0x380] sm:$0xff]
        %v458 = vld [vmem:[%s299 + $0x388] sm:$0xff]
        %v459 = vld [vmem:[%s299 + $0x390] sm:$0xff]
        %v460 = vld [vmem:[%s299 + $0x398] sm:$0xff]
        %v461 = vld [vmem:[%s299 + $0x3a0] sm:$0xff]
        %v462 = vld [vmem:[%s299 + $0x3a8] sm:$0xff]
        %v463 = vld [vmem:[%s299 + $0x3b0] sm:$0xff]
        %v464 = vld [vmem:[%s299 + $0x3b8] sm:$0xff]
        %v465 = vld [vmem:[%s299 + $0x3c0] sm:$0xff]
        %v466 = vld [vmem:[%s299 + $0x3c8] sm:$0xff]
        %v467 = vld [vmem:[%s299 + $0x3d0] sm:$0xff]
        %v468 = vld [vmem:[%s299 + $0x3d8] sm:$0xff]
        %v469 = vld [vmem:[%s299 + $0x3e0] sm:$0xff]
        %v470 = vld [vmem:[%s299 + $0x3e8] sm:$0xff]
        %v471 = vld [vmem:[%s299 + $0x3f0] sm:$0xff]
        %v472 = vld [vmem:[%s299 + $0x3f8] sm:$0xff]
        %v473 = vpack.c.bf16 %v353, %v345
        %v474 = vpack.c.bf16 %v354, %v346
        %v475 = vpack.c.bf16 %v355, %v347
        %v476 = vpack.c.bf16 %v356, %v348
        %v477 = vpack.c.bf16 %v357, %v349
        %v478 = vpack.c.bf16 %v358, %v350
        %v479 = vpack.c.bf16 %v359, %v351
        %v480 = vpack.c.bf16 %v360, %v352
        %v481 = vpack.c.bf16 %v369, %v361
        %v482 = vpack.c.bf16 %v370, %v362
        %v483 = vpack.c.bf16 %v371, %v363
        %v484 = vpack.c.bf16 %v372, %v364
        %v485 = vpack.c.bf16 %v373, %v365
        %v486 = vpack.c.bf16 %v374, %v366
        %v487 = vpack.c.bf16 %v375, %v367
        %v488 = vpack.c.bf16 %v376, %v368
        %v489 = vpack.c.bf16 %v385, %v377
        %v490 = vpack.c.bf16 %v386, %v378
        %v491 = vpack.c.bf16 %v387, %v379
        %v492 = vpack.c.bf16 %v388, %v380
        %v493 = vpack.c.bf16 %v389, %v381
        %v494 = vpack.c.bf16 %v390, %v382
        %v495 = vpack.c.bf16 %v391, %v383
        %v496 = vpack.c.bf16 %v392, %v384
        %v497 = vpack.c.bf16 %v401, %v393
        %v498 = vpack.c.bf16 %v402, %v394
        %v499 = vpack.c.bf16 %v403, %v395
        %v500 = vpack.c.bf16 %v404, %v396
        %v501 = vpack.c.bf16 %v405, %v397
        %v502 = vpack.c.bf16 %v406, %v398
        %v503 = vpack.c.bf16 %v407, %v399
        %v504 = vpack.c.bf16 %v408, %v400
        %v505 = vpack.c.bf16 %v417, %v409
        %v506 = vpack.c.bf16 %v418, %v410
        %v507 = vpack.c.bf16 %v419, %v411
        %v508 = vpack.c.bf16 %v420, %v412
        %v509 = vpack.c.bf16 %v421, %v413
        %v510 = vpack.c.bf16 %v422, %v414
        %v511 = vpack.c.bf16 %v423, %v415
        %v512 = vpack.c.bf16 %v424, %v416
        %v513 = vpack.c.bf16 %v433, %v425
        %v514 = vpack.c.bf16 %v434, %v426
        %v515 = vpack.c.bf16 %v435, %v427
        %v516 = vpack.c.bf16 %v436, %v428
        %v517 = vpack.c.bf16 %v437, %v429
        %v518 = vpack.c.bf16 %v438, %v430
        %v519 = vpack.c.bf16 %v439, %v431
        %v520 = vpack.c.bf16 %v440, %v432
        %v521 = vpack.c.bf16 %v449, %v441
        %v522 = vpack.c.bf16 %v450, %v442
        %v523 = vpack.c.bf16 %v451, %v443
        %v524 = vpack.c.bf16 %v452, %v444
        %v525 = vpack.c.bf16 %v453, %v445
        %v526 = vpack.c.bf16 %v454, %v446
        %v527 = vpack.c.bf16 %v455, %v447
        %v528 = vpack.c.bf16 %v456, %v448
        %v529 = vpack.c.bf16 %v465, %v457
        %v530 = vpack.c.bf16 %v466, %v458
        %v531 = vpack.c.bf16 %v467, %v459
        %v532 = vpack.c.bf16 %v468, %v460
        %v533 = vpack.c.bf16 %v469, %v461
        %v534 = vpack.c.bf16 %v470, %v462
        %v535 = vpack.c.bf16 %v471, %v463
        %v536 = vpack.c.bf16 %v472, %v464
        %v537 = vld [vmem:[#allocation5] sm:$0xff]
        %v538 = vld [vmem:[#allocation5 + $0x8] sm:$0xff]
        %v539 = vld [vmem:[#allocation5 + $0x10] sm:$0xff]
        %v540 = vld [vmem:[#allocation5 + $0x18] sm:$0xff]
        %v541 = vld [vmem:[#allocation5 + $0x20] sm:$0xff]
        %v542 = vld [vmem:[#allocation5 + $0x28] sm:$0xff]
        %v543 = vld [vmem:[#allocation5 + $0x30] sm:$0xff]
        %v544 = vld [vmem:[#allocation5 + $0x38] sm:$0xff]
        %v545 = vld [vmem:[#allocation5 + $0x40] sm:$0xff]
        %v546 = vld [vmem:[#allocation5 + $0x48] sm:$0xff]
        %v547 = vld [vmem:[#allocation5 + $0x50] sm:$0xff]
        %v548 = vld [vmem:[#allocation5 + $0x58] sm:$0xff]
        %v549 = vld [vmem:[#allocation5 + $0x60] sm:$0xff]
        %v550 = vld [vmem:[#allocation5 + $0x68] sm:$0xff]
        %v551 = vld [vmem:[#allocation5 + $0x70] sm:$0xff]
        %v552 = vld [vmem:[#allocation5 + $0x78] sm:$0xff]
        %v553 = vld [vmem:[#allocation5 + $0x80] sm:$0xff]
        %v554 = vld [vmem:[#allocation5 + $0x88] sm:$0xff]
        %v555 = vld [vmem:[#allocation5 + $0x90] sm:$0xff]
        %v556 = vld [vmem:[#allocation5 + $0x98] sm:$0xff]
        %v557 = vld [vmem:[#allocation5 + $0xa0] sm:$0xff]
        %v558 = vld [vmem:[#allocation5 + $0xa8] sm:$0xff]
        %v559 = vld [vmem:[#allocation5 + $0xb0] sm:$0xff]
        %v560 = vld [vmem:[#allocation5 + $0xb8] sm:$0xff]
        %v561 = vld [vmem:[#allocation5 + $0xc0] sm:$0xff]
        %v562 = vld [vmem:[#allocation5 + $0xc8] sm:$0xff]
        %v563 = vld [vmem:[#allocation5 + $0xd0] sm:$0xff]
        %v564 = vld [vmem:[#allocation5 + $0xd8] sm:$0xff]
        %v565 = vld [vmem:[#allocation5 + $0xe0] sm:$0xff]
        %v566 = vld [vmem:[#allocation5 + $0xe8] sm:$0xff]
        %v567 = vld [vmem:[#allocation5 + $0xf0] sm:$0xff]
        %v568 = vld [vmem:[#allocation5 + $0xf8] sm:$0xff]
        %v569 = vld [vmem:[#allocation5 + $0x100] sm:$0xff]
        %v570 = vld [vmem:[#allocation5 + $0x108] sm:$0xff]
        %v571 = vld [vmem:[#allocation5 + $0x110] sm:$0xff]
        %v572 = vld [vmem:[#allocation5 + $0x118] sm:$0xff]
        %v573 = vld [vmem:[#allocation5 + $0x120] sm:$0xff]
        %v574 = vld [vmem:[#allocation5 + $0x128] sm:$0xff]
        %v575 = vld [vmem:[#allocation5 + $0x130] sm:$0xff]
        %v576 = vld [vmem:[#allocation5 + $0x138] sm:$0xff]
        %v577 = vld [vmem:[#allocation5 + $0x140] sm:$0xff]
        %v578 = vld [vmem:[#allocation5 + $0x148] sm:$0xff]
        %v579 = vld [vmem:[#allocation5 + $0x150] sm:$0xff]
        %v580 = vld [vmem:[#allocation5 + $0x158] sm:$0xff]
        %v581 = vld [vmem:[#allocation5 + $0x160] sm:$0xff]
        %v582 = vld [vmem:[#allocation5 + $0x168] sm:$0xff]
        %v583 = vld [vmem:[#allocation5 + $0x170] sm:$0xff]
        %v584 = vld [vmem:[#allocation5 + $0x178] sm:$0xff]
        %v585 = vld [vmem:[#allocation5 + $0x180] sm:$0xff]
        %v586 = vld [vmem:[#allocation5 + $0x188] sm:$0xff]
        %v587 = vld [vmem:[#allocation5 + $0x190] sm:$0xff]
        %v588 = vld [vmem:[#allocation5 + $0x198] sm:$0xff]
        %v589 = vld [vmem:[#allocation5 + $0x1a0] sm:$0xff]
        %v590 = vld [vmem:[#allocation5 + $0x1a8] sm:$0xff]
        %v591 = vld [vmem:[#allocation5 + $0x1b0] sm:$0xff]
        %v592 = vld [vmem:[#allocation5 + $0x1b8] sm:$0xff]
        %v593 = vld [vmem:[#allocation5 + $0x1c0] sm:$0xff]
        %v594 = vld [vmem:[#allocation5 + $0x1c8] sm:$0xff]
        %v595 = vld [vmem:[#allocation5 + $0x1d0] sm:$0xff]
        %v596 = vld [vmem:[#allocation5 + $0x1d8] sm:$0xff]
        %v597 = vld [vmem:[#allocation5 + $0x1e0] sm:$0xff]
        %v598 = vld [vmem:[#allocation5 + $0x1e8] sm:$0xff]
        %v599 = vld [vmem:[#allocation5 + $0x1f0] sm:$0xff]
        %v600 = vld [vmem:[#allocation5 + $0x1f8] sm:$0xff]
        %v601 = vld [vmem:[#allocation5 + $0x200] sm:$0xff]
        %v602 = vld [vmem:[#allocation5 + $0x208] sm:$0xff]
        %v603 = vld [vmem:[#allocation5 + $0x210] sm:$0xff]
        %v604 = vld [vmem:[#allocation5 + $0x218] sm:$0xff]
        %v605 = vld [vmem:[#allocation5 + $0x220] sm:$0xff]
        %v606 = vld [vmem:[#allocation5 + $0x228] sm:$0xff]
        %v607 = vld [vmem:[#allocation5 + $0x230] sm:$0xff]
        %v608 = vld [vmem:[#allocation5 + $0x238] sm:$0xff]
        %v609 = vld [vmem:[#allocation5 + $0x240] sm:$0xff]
        %v610 = vld [vmem:[#allocation5 + $0x248] sm:$0xff]
        %v611 = vld [vmem:[#allocation5 + $0x250] sm:$0xff]
        %v612 = vld [vmem:[#allocation5 + $0x258] sm:$0xff]
        %v613 = vld [vmem:[#allocation5 + $0x260] sm:$0xff]
        %v614 = vld [vmem:[#allocation5 + $0x268] sm:$0xff]
        %v615 = vld [vmem:[#allocation5 + $0x270] sm:$0xff]
        %v616 = vld [vmem:[#allocation5 + $0x278] sm:$0xff]
        %v617 = vld [vmem:[#allocation5 + $0x280] sm:$0xff]
        %v618 = vld [vmem:[#allocation5 + $0x288] sm:$0xff]
        %v619 = vld [vmem:[#allocation5 + $0x290] sm:$0xff]
        %v620 = vld [vmem:[#allocation5 + $0x298] sm:$0xff]
        %v621 = vld [vmem:[#allocation5 + $0x2a0] sm:$0xff]
        %v622 = vld [vmem:[#allocation5 + $0x2a8] sm:$0xff]
        %v623 = vld [vmem:[#allocation5 + $0x2b0] sm:$0xff]
        %v624 = vld [vmem:[#allocation5 + $0x2b8] sm:$0xff]
        %v625 = vld [vmem:[#allocation5 + $0x2c0] sm:$0xff]
        %v626 = vld [vmem:[#allocation5 + $0x2c8] sm:$0xff]
        %v627 = vld [vmem:[#allocation5 + $0x2d0] sm:$0xff]
        %v628 = vld [vmem:[#allocation5 + $0x2d8] sm:$0xff]
        %v629 = vld [vmem:[#allocation5 + $0x2e0] sm:$0xff]
        %v630 = vld [vmem:[#allocation5 + $0x2e8] sm:$0xff]
        %v631 = vld [vmem:[#allocation5 + $0x2f0] sm:$0xff]
        %v632 = vld [vmem:[#allocation5 + $0x2f8] sm:$0xff]
        %v633 = vld [vmem:[#allocation5 + $0x300] sm:$0xff]
        %v634 = vld [vmem:[#allocation5 + $0x308] sm:$0xff]
        %v635 = vld [vmem:[#allocation5 + $0x310] sm:$0xff]
        %v636 = vld [vmem:[#allocation5 + $0x318] sm:$0xff]
        %v637 = vld [vmem:[#allocation5 + $0x320] sm:$0xff]
        %v638 = vld [vmem:[#allocation5 + $0x328] sm:$0xff]
        %v639 = vld [vmem:[#allocation5 + $0x330] sm:$0xff]
        %v640 = vld [vmem:[#allocation5 + $0x338] sm:$0xff]
        %v641 = vld [vmem:[#allocation5 + $0x340] sm:$0xff]
        %v642 = vld [vmem:[#allocation5 + $0x348] sm:$0xff]
        %v643 = vld [vmem:[#allocation5 + $0x350] sm:$0xff]
        %v644 = vld [vmem:[#allocation5 + $0x358] sm:$0xff]
        %v645 = vld [vmem:[#allocation5 + $0x360] sm:$0xff]
        %v646 = vld [vmem:[#allocation5 + $0x368] sm:$0xff]
        %v647 = vld [vmem:[#allocation5 + $0x370] sm:$0xff]
        %v648 = vld [vmem:[#allocation5 + $0x378] sm:$0xff]
        %v649 = vld [vmem:[#allocation5 + $0x380] sm:$0xff]
        %v650 = vld [vmem:[#allocation5 + $0x388] sm:$0xff]
        %v651 = vld [vmem:[#allocation5 + $0x390] sm:$0xff]
        %v652 = vld [vmem:[#allocation5 + $0x398] sm:$0xff]
        %v653 = vld [vmem:[#allocation5 + $0x3a0] sm:$0xff]
        %v654 = vld [vmem:[#allocation5 + $0x3a8] sm:$0xff]
        %v655 = vld [vmem:[#allocation5 + $0x3b0] sm:$0xff]
        %v656 = vld [vmem:[#allocation5 + $0x3b8] sm:$0xff]
        %v657 = vld [vmem:[#allocation5 + $0x3c0] sm:$0xff]
        %v658 = vld [vmem:[#allocation5 + $0x3c8] sm:$0xff]
        %v659 = vld [vmem:[#allocation5 + $0x3d0] sm:$0xff]
        %v660 = vld [vmem:[#allocation5 + $0x3d8] sm:$0xff]
        %v661 = vld [vmem:[#allocation5 + $0x3e0] sm:$0xff]
        %v662 = vld [vmem:[#allocation5 + $0x3e8] sm:$0xff]
        %v663 = vld [vmem:[#allocation5 + $0x3f0] sm:$0xff]
        %v664 = vld [vmem:[#allocation5 + $0x3f8] sm:$0xff]
        %v665 = vld [vmem:[%s2] sm:$0x3]
        %v667 = vlaneseq
        %v668 = vshrl.u32 %v667, 7
        %v669 = vsub.s32 0, %v668
        %v670 = vrot.slane %v665, %v669
        %v671 = vlaneseq
        %v672 = vshrl.u32 %v671, 7
        %v673 = vsub.s32 1, %v672
        %v674 = vrot.slane %v665, %v673
        %v805 = vunpack.c.l.b16 %v537
        %v806 = vunpack.c.h.b16 %v537
        %v807 = vunpack.c.l.b16 %v538
        %v808 = vunpack.c.h.b16 %v538
        %v809 = vunpack.c.l.b16 %v539
        %v810 = vunpack.c.h.b16 %v539
        %v811 = vunpack.c.l.b16 %v540
        %v812 = vunpack.c.h.b16 %v540
        %v813 = vunpack.c.l.b16 %v541
        %v814 = vunpack.c.h.b16 %v541
        %v815 = vunpack.c.l.b16 %v542
        %v816 = vunpack.c.h.b16 %v542
        %v817 = vunpack.c.l.b16 %v543
        %v818 = vunpack.c.h.b16 %v543
        %v819 = vunpack.c.l.b16 %v544
        %v820 = vunpack.c.h.b16 %v544
        %v821 = vunpack.c.l.b16 %v545
        %v822 = vunpack.c.h.b16 %v545
        %v823 = vunpack.c.l.b16 %v546
        %v824 = vunpack.c.h.b16 %v546
        %v825 = vunpack.c.l.b16 %v547
        %v826 = vunpack.c.h.b16 %v547
        %v827 = vunpack.c.l.b16 %v548
        %v828 = vunpack.c.h.b16 %v548
        %v829 = vunpack.c.l.b16 %v549
        %v830 = vunpack.c.h.b16 %v549
        %v831 = vunpack.c.l.b16 %v550
        %v832 = vunpack.c.h.b16 %v550
        %v833 = vunpack.c.l.b16 %v551
        %v834 = vunpack.c.h.b16 %v551
        %v835 = vunpack.c.l.b16 %v552
        %v836 = vunpack.c.h.b16 %v552
        %v837 = vunpack.c.l.b16 %v553
        %v838 = vunpack.c.h.b16 %v553
        %v839 = vunpack.c.l.b16 %v554
        %v840 = vunpack.c.h.b16 %v554
        %v841 = vunpack.c.l.b16 %v555
        %v842 = vunpack.c.h.b16 %v555
        %v843 = vunpack.c.l.b16 %v556
        %v844 = vunpack.c.h.b16 %v556
        %v845 = vunpack.c.l.b16 %v557
        %v846 = vunpack.c.h.b16 %v557
        %v847 = vunpack.c.l.b16 %v558
        %v848 = vunpack.c.h.b16 %v558
        %v849 = vunpack.c.l.b16 %v559
        %v850 = vunpack.c.h.b16 %v559
        %v851 = vunpack.c.l.b16 %v560
        %v852 = vunpack.c.h.b16 %v560
        %v853 = vunpack.c.l.b16 %v561
        %v854 = vunpack.c.h.b16 %v561
        %v855 = vunpack.c.l.b16 %v562
        %v856 = vunpack.c.h.b16 %v562
        %v857 = vunpack.c.l.b16 %v563
        %v858 = vunpack.c.h.b16 %v563
        %v859 = vunpack.c.l.b16 %v564
        %v860 = vunpack.c.h.b16 %v564
        %v861 = vunpack.c.l.b16 %v565
        %v862 = vunpack.c.h.b16 %v565
        %v863 = vunpack.c.l.b16 %v566
        %v864 = vunpack.c.h.b16 %v566
        %v865 = vunpack.c.l.b16 %v567
        %v866 = vunpack.c.h.b16 %v567
        %v867 = vunpack.c.l.b16 %v568
        %v868 = vunpack.c.h.b16 %v568
        %v869 = vunpack.c.l.b16 %v569
        %v870 = vunpack.c.h.b16 %v569
        %v871 = vunpack.c.l.b16 %v570
        %v872 = vunpack.c.h.b16 %v570
        %v873 = vunpack.c.l.b16 %v571
        %v874 = vunpack.c.h.b16 %v571
        %v875 = vunpack.c.l.b16 %v572
        %v876 = vunpack.c.h.b16 %v572
        %v877 = vunpack.c.l.b16 %v573
        %v878 = vunpack.c.h.b16 %v573
        %v879 = vunpack.c.l.b16 %v574
        %v880 = vunpack.c.h.b16 %v574
        %v881 = vunpack.c.l.b16 %v575
        %v882 = vunpack.c.h.b16 %v575
        %v883 = vunpack.c.l.b16 %v576
        %v884 = vunpack.c.h.b16 %v576
        %v885 = vunpack.c.l.b16 %v577
        %v886 = vunpack.c.h.b16 %v577
        %v887 = vunpack.c.l.b16 %v578
        %v888 = vunpack.c.h.b16 %v578
        %v889 = vunpack.c.l.b16 %v579
        %v890 = vunpack.c.h.b16 %v579
        %v891 = vunpack.c.l.b16 %v580
        %v892 = vunpack.c.h.b16 %v580
        %v893 = vunpack.c.l.b16 %v581
        %v894 = vunpack.c.h.b16 %v581
        %v895 = vunpack.c.l.b16 %v582
        %v896 = vunpack.c.h.b16 %v582
        %v897 = vunpack.c.l.b16 %v583
        %v898 = vunpack.c.h.b16 %v583
        %v899 = vunpack.c.l.b16 %v584
        %v900 = vunpack.c.h.b16 %v584
        %v901 = vunpack.c.l.b16 %v585
        %v902 = vunpack.c.h.b16 %v585
        %v903 = vunpack.c.l.b16 %v586
        %v904 = vunpack.c.h.b16 %v586
        %v905 = vunpack.c.l.b16 %v587
        %v906 = vunpack.c.h.b16 %v587
        %v907 = vunpack.c.l.b16 %v588
        %v908 = vunpack.c.h.b16 %v588
        %v909 = vunpack.c.l.b16 %v589
        %v910 = vunpack.c.h.b16 %v589
        %v911 = vunpack.c.l.b16 %v590
        %v912 = vunpack.c.h.b16 %v590
        %v913 = vunpack.c.l.b16 %v591
        %v914 = vunpack.c.h.b16 %v591
        %v915 = vunpack.c.l.b16 %v592
        %v916 = vunpack.c.h.b16 %v592
        %v917 = vunpack.c.l.b16 %v593
        %v918 = vunpack.c.h.b16 %v593
        %v919 = vunpack.c.l.b16 %v594
        %v920 = vunpack.c.h.b16 %v594
        %v921 = vunpack.c.l.b16 %v595
        %v922 = vunpack.c.h.b16 %v595
        %v923 = vunpack.c.l.b16 %v596
        %v924 = vunpack.c.h.b16 %v596
        %v925 = vunpack.c.l.b16 %v597
        %v926 = vunpack.c.h.b16 %v597
        %v927 = vunpack.c.l.b16 %v598
        %v928 = vunpack.c.h.b16 %v598
        %v929 = vunpack.c.l.b16 %v599
        %v930 = vunpack.c.h.b16 %v599
        %v931 = vunpack.c.l.b16 %v600
        %v932 = vunpack.c.h.b16 %v600
        %v933 = vunpack.c.l.b16 %v601
        %v934 = vunpack.c.h.b16 %v601
        %v935 = vunpack.c.l.b16 %v602
        %v936 = vunpack.c.h.b16 %v602
        %v937 = vunpack.c.l.b16 %v603
        %v938 = vunpack.c.h.b16 %v603
        %v939 = vunpack.c.l.b16 %v604
        %v940 = vunpack.c.h.b16 %v604
        %v941 = vunpack.c.l.b16 %v605
        %v942 = vunpack.c.h.b16 %v605
        %v943 = vunpack.c.l.b16 %v606
        %v944 = vunpack.c.h.b16 %v606
        %v945 = vunpack.c.l.b16 %v607
        %v946 = vunpack.c.h.b16 %v607
        %v947 = vunpack.c.l.b16 %v608
        %v948 = vunpack.c.h.b16 %v608
        %v949 = vunpack.c.l.b16 %v609
        %v950 = vunpack.c.h.b16 %v609
        %v951 = vunpack.c.l.b16 %v610
        %v952 = vunpack.c.h.b16 %v610
        %v953 = vunpack.c.l.b16 %v611
        %v954 = vunpack.c.h.b16 %v611
        %v955 = vunpack.c.l.b16 %v612
        %v956 = vunpack.c.h.b16 %v612
        %v957 = vunpack.c.l.b16 %v613
        %v958 = vunpack.c.h.b16 %v613
        %v959 = vunpack.c.l.b16 %v614
        %v960 = vunpack.c.h.b16 %v614
        %v961 = vunpack.c.l.b16 %v615
        %v962 = vunpack.c.h.b16 %v615
        %v963 = vunpack.c.l.b16 %v616
        %v964 = vunpack.c.h.b16 %v616
        %v965 = vunpack.c.l.b16 %v617
        %v966 = vunpack.c.h.b16 %v617
        %v967 = vunpack.c.l.b16 %v618
        %v968 = vunpack.c.h.b16 %v618
        %v969 = vunpack.c.l.b16 %v619
        %v970 = vunpack.c.h.b16 %v619
        %v971 = vunpack.c.l.b16 %v620
        %v972 = vunpack.c.h.b16 %v620
        %v973 = vunpack.c.l.b16 %v621
        %v974 = vunpack.c.h.b16 %v621
        %v975 = vunpack.c.l.b16 %v622
        %v976 = vunpack.c.h.b16 %v622
        %v977 = vunpack.c.l.b16 %v623
        %v978 = vunpack.c.h.b16 %v623
        %v979 = vunpack.c.l.b16 %v624
        %v980 = vunpack.c.h.b16 %v624
        %v981 = vunpack.c.l.b16 %v625
        %v982 = vunpack.c.h.b16 %v625
        %v983 = vunpack.c.l.b16 %v626
        %v984 = vunpack.c.h.b16 %v626
        %v985 = vunpack.c.l.b16 %v627
        %v986 = vunpack.c.h.b16 %v627
        %v987 = vunpack.c.l.b16 %v628
        %v988 = vunpack.c.h.b16 %v628
        %v989 = vunpack.c.l.b16 %v629
        %v990 = vunpack.c.h.b16 %v629
        %v991 = vunpack.c.l.b16 %v630
        %v992 = vunpack.c.h.b16 %v630
        %v993 = vunpack.c.l.b16 %v631
        %v994 = vunpack.c.h.b16 %v631
        %v995 = vunpack.c.l.b16 %v632
        %v996 = vunpack.c.h.b16 %v632
        %v997 = vunpack.c.l.b16 %v633
        %v998 = vunpack.c.h.b16 %v633
        %v999 = vunpack.c.l.b16 %v634
        %v1000 = vunpack.c.h.b16 %v634
        %v1001 = vunpack.c.l.b16 %v635
        %v1002 = vunpack.c.h.b16 %v635
        %v1003 = vunpack.c.l.b16 %v636
        %v1004 = vunpack.c.h.b16 %v636
        %v1005 = vunpack.c.l.b16 %v637
        %v1006 = vunpack.c.h.b16 %v637
        %v1007 = vunpack.c.l.b16 %v638
        %v1008 = vunpack.c.h.b16 %v638
        %v1009 = vunpack.c.l.b16 %v639
        %v1010 = vunpack.c.h.b16 %v639
        %v1011 = vunpack.c.l.b16 %v640
        %v1012 = vunpack.c.h.b16 %v640
        %v1013 = vunpack.c.l.b16 %v641
        %v1014 = vunpack.c.h.b16 %v641
        %v1015 = vunpack.c.l.b16 %v642
        %v1016 = vunpack.c.h.b16 %v642
        %v1017 = vunpack.c.l.b16 %v643
        %v1018 = vunpack.c.h.b16 %v643
        %v1019 = vunpack.c.l.b16 %v644
        %v1020 = vunpack.c.h.b16 %v644
        %v1021 = vunpack.c.l.b16 %v645
        %v1022 = vunpack.c.h.b16 %v645
        %v1023 = vunpack.c.l.b16 %v646
        %v1024 = vunpack.c.h.b16 %v646
        %v1025 = vunpack.c.l.b16 %v647
        %v1026 = vunpack.c.h.b16 %v647
        %v1027 = vunpack.c.l.b16 %v648
        %v1028 = vunpack.c.h.b16 %v648
        %v1029 = vunpack.c.l.b16 %v649
        %v1030 = vunpack.c.h.b16 %v649
        %v1031 = vunpack.c.l.b16 %v650
        %v1032 = vunpack.c.h.b16 %v650
        %v1033 = vunpack.c.l.b16 %v651
        %v1034 = vunpack.c.h.b16 %v651
        %v1035 = vunpack.c.l.b16 %v652
        %v1036 = vunpack.c.h.b16 %v652
        %v1037 = vunpack.c.l.b16 %v653
        %v1038 = vunpack.c.h.b16 %v653
        %v1039 = vunpack.c.l.b16 %v654
        %v1040 = vunpack.c.h.b16 %v654
        %v1041 = vunpack.c.l.b16 %v655
        %v1042 = vunpack.c.h.b16 %v655
        %v1043 = vunpack.c.l.b16 %v656
        %v1044 = vunpack.c.h.b16 %v656
        %v1045 = vunpack.c.l.b16 %v657
        %v1046 = vunpack.c.h.b16 %v657
        %v1047 = vunpack.c.l.b16 %v658
        %v1048 = vunpack.c.h.b16 %v658
        %v1049 = vunpack.c.l.b16 %v659
        %v1050 = vunpack.c.h.b16 %v659
        %v1051 = vunpack.c.l.b16 %v660
        %v1052 = vunpack.c.h.b16 %v660
        %v1053 = vunpack.c.l.b16 %v661
        %v1054 = vunpack.c.h.b16 %v661
        %v1055 = vunpack.c.l.b16 %v662
        %v1056 = vunpack.c.h.b16 %v662
        %v1057 = vunpack.c.l.b16 %v663
        %v1058 = vunpack.c.h.b16 %v663
        %v1059 = vunpack.c.l.b16 %v664
        %v1060 = vunpack.c.h.b16 %v664
        %v1061 = vpack.c.b16 %v807, %v805
        %v1062 = vpack.c.b16 %v808, %v806
        %v1063 = vpack.c.b16 %v811, %v809
        %v1064 = vpack.c.b16 %v812, %v810
        %v1065 = vpack.c.b16 %v815, %v813
        %v1066 = vpack.c.b16 %v816, %v814
        %v1067 = vpack.c.b16 %v819, %v817
        %v1068 = vpack.c.b16 %v820, %v818
        %v1069 = vpack.c.b16 %v823, %v821
        %v1070 = vpack.c.b16 %v824, %v822
        %v1071 = vpack.c.b16 %v827, %v825
        %v1072 = vpack.c.b16 %v828, %v826
        %v1073 = vpack.c.b16 %v831, %v829
        %v1074 = vpack.c.b16 %v832, %v830
        %v1075 = vpack.c.b16 %v835, %v833
        %v1076 = vpack.c.b16 %v836, %v834
        %v1077 = vpack.c.b16 %v839, %v837
        %v1078 = vpack.c.b16 %v840, %v838
        %v1079 = vpack.c.b16 %v843, %v841
        %v1080 = vpack.c.b16 %v844, %v842
        %v1081 = vpack.c.b16 %v847, %v845
        %v1082 = vpack.c.b16 %v848, %v846
        %v1083 = vpack.c.b16 %v851, %v849
        %v1084 = vpack.c.b16 %v852, %v850
        %v1085 = vpack.c.b16 %v855, %v853
        %v1086 = vpack.c.b16 %v856, %v854
        %v1087 = vpack.c.b16 %v859, %v857
        %v1088 = vpack.c.b16 %v860, %v858
        %v1089 = vpack.c.b16 %v863, %v861
        %v1090 = vpack.c.b16 %v864, %v862
        %v1091 = vpack.c.b16 %v867, %v865
        %v1092 = vpack.c.b16 %v868, %v866
        %v1093 = vpack.c.b16 %v871, %v869
        %v1094 = vpack.c.b16 %v872, %v870
        %v1095 = vpack.c.b16 %v875, %v873
        %v1096 = vpack.c.b16 %v876, %v874
        %v1097 = vpack.c.b16 %v879, %v877
        %v1098 = vpack.c.b16 %v880, %v878
        %v1099 = vpack.c.b16 %v883, %v881
        %v1100 = vpack.c.b16 %v884, %v882
        %v1101 = vpack.c.b16 %v887, %v885
        %v1102 = vpack.c.b16 %v888, %v886
        %v1103 = vpack.c.b16 %v891, %v889
        %v1104 = vpack.c.b16 %v892, %v890
        %v1105 = vpack.c.b16 %v895, %v893
        %v1106 = vpack.c.b16 %v896, %v894
        %v1107 = vpack.c.b16 %v899, %v897
        %v1108 = vpack.c.b16 %v900, %v898
        %v1109 = vpack.c.b16 %v903, %v901
        %v1110 = vpack.c.b16 %v904, %v902
        %v1111 = vpack.c.b16 %v907, %v905
        %v1112 = vpack.c.b16 %v908, %v906
        %v1113 = vpack.c.b16 %v911, %v909
        %v1114 = vpack.c.b16 %v912, %v910
        %v1115 = vpack.c.b16 %v915, %v913
        %v1116 = vpack.c.b16 %v916, %v914
        %v1117 = vpack.c.b16 %v919, %v917
        %v1118 = vpack.c.b16 %v920, %v918
        %v1119 = vpack.c.b16 %v923, %v921
        %v1120 = vpack.c.b16 %v924, %v922
        %v1121 = vpack.c.b16 %v927, %v925
        %v1122 = vpack.c.b16 %v928, %v926
        %v1123 = vpack.c.b16 %v931, %v929
        %v1124 = vpack.c.b16 %v932, %v930
        %v1125 = vpack.c.b16 %v935, %v933
        %v1126 = vpack.c.b16 %v936, %v934
        %v1127 = vpack.c.b16 %v939, %v937
        %v1128 = vpack.c.b16 %v940, %v938
        %v1129 = vpack.c.b16 %v943, %v941
        %v1130 = vpack.c.b16 %v944, %v942
        %v1131 = vpack.c.b16 %v947, %v945
        %v1132 = vpack.c.b16 %v948, %v946
        %v1133 = vpack.c.b16 %v951, %v949
        %v1134 = vpack.c.b16 %v952, %v950
        %v1135 = vpack.c.b16 %v955, %v953
        %v1136 = vpack.c.b16 %v956, %v954
        %v1137 = vpack.c.b16 %v959, %v957
        %v1138 = vpack.c.b16 %v960, %v958
        %v1139 = vpack.c.b16 %v963, %v961
        %v1140 = vpack.c.b16 %v964, %v962
        %v1141 = vpack.c.b16 %v967, %v965
        %v1142 = vpack.c.b16 %v968, %v966
        %v1143 = vpack.c.b16 %v971, %v969
        %v1144 = vpack.c.b16 %v972, %v970
        %v1145 = vpack.c.b16 %v975, %v973
        %v1146 = vpack.c.b16 %v976, %v974
        %v1147 = vpack.c.b16 %v979, %v977
        %v1148 = vpack.c.b16 %v980, %v978
        %v1149 = vpack.c.b16 %v983, %v981
        %v1150 = vpack.c.b16 %v984, %v982
        %v1151 = vpack.c.b16 %v987, %v985
        %v1152 = vpack.c.b16 %v988, %v986
        %v1153 = vpack.c.b16 %v991, %v989
        %v1154 = vpack.c.b16 %v992, %v990
        %v1155 = vpack.c.b16 %v995, %v993
        %v1156 = vpack.c.b16 %v996, %v994
        %v1157 = vpack.c.b16 %v999, %v997
        %v1158 = vpack.c.b16 %v1000, %v998
        %v1159 = vpack.c.b16 %v1003, %v1001
        %v1160 = vpack.c.b16 %v1004, %v1002
        %v1161 = vpack.c.b16 %v1007, %v1005
        %v1162 = vpack.c.b16 %v1008, %v1006
        %v1163 = vpack.c.b16 %v1011, %v1009
        %v1164 = vpack.c.b16 %v1012, %v1010
        %v1165 = vpack.c.b16 %v1015, %v1013
        %v1166 = vpack.c.b16 %v1016, %v1014
        %v1167 = vpack.c.b16 %v1019, %v1017
        %v1168 = vpack.c.b16 %v1020, %v1018
        %v1169 = vpack.c.b16 %v1023, %v1021
        %v1170 = vpack.c.b16 %v1024, %v1022
        %v1171 = vpack.c.b16 %v1027, %v1025
        %v1172 = vpack.c.b16 %v1028, %v1026
        %v1173 = vpack.c.b16 %v1031, %v1029
        %v1174 = vpack.c.b16 %v1032, %v1030
        %v1175 = vpack.c.b16 %v1035, %v1033
        %v1176 = vpack.c.b16 %v1036, %v1034
        %v1177 = vpack.c.b16 %v1039, %v1037
        %v1178 = vpack.c.b16 %v1040, %v1038
        %v1179 = vpack.c.b16 %v1043, %v1041
        %v1180 = vpack.c.b16 %v1044, %v1042
        %v1181 = vpack.c.b16 %v1047, %v1045
        %v1182 = vpack.c.b16 %v1048, %v1046
        %v1183 = vpack.c.b16 %v1051, %v1049
        %v1184 = vpack.c.b16 %v1052, %v1050
        %v1185 = vpack.c.b16 %v1055, %v1053
        %v1186 = vpack.c.b16 %v1056, %v1054
        %v1187 = vpack.c.b16 %v1059, %v1057
        %v1188 = vpack.c.b16 %v1060, %v1058
        %1317 = vmatprep.subr.bf16.mxu0 %v1076
        %1318 = vmatpush1.bf16.msra.mxu0 %v1075
        %1319 = vmatprep.subr.bf16.mxu0 %v1074
        %1320 = vmatpush1.bf16.msra.mxu0 %v1073
        %1321 = vmatprep.subr.bf16.mxu0 %v1072
        %1322 = vmatpush1.bf16.msra.mxu0 %v1071
        %1323 = vmatprep.subr.bf16.mxu0 %v1070
        %1324 = vmatpush1.bf16.msra.mxu0 %v1069
        %1325 = vmatprep.subr.bf16.mxu0 %v1068
        %1326 = vmatpush1.bf16.msra.mxu0 %v1067
        %1327 = vmatprep.subr.bf16.mxu0 %v1066
        %1328 = vmatpush1.bf16.msra.mxu0 %v1065
        %1329 = vmatprep.subr.bf16.mxu0 %v1064
        %1330 = vmatpush1.bf16.msra.mxu0 %v1063
        %1331 = vmatprep.subr.bf16.mxu0 %v1062
        %1332 = vmatpush1.bf16.msra.mxu0 %v1061
        %1333 = vmatprep.subr.bf16.mxu0 %v1092
        %1334 = vmatpush2.bf16.msra.mxu0 %v1091
        %1335 = vmatprep.subr.bf16.mxu0 %v1090
        %1336 = vmatpush2.bf16.msra.mxu0 %v1089
        %1337 = vmatprep.subr.bf16.mxu0 %v1088
        %1338 = vmatpush2.bf16.msra.mxu0 %v1087
        %1339 = vmatprep.subr.bf16.mxu0 %v1086
        %1340 = vmatpush2.bf16.msra.mxu0 %v1085
        %1341 = vmatprep.subr.bf16.mxu0 %v1084
        %1342 = vmatpush2.bf16.msra.mxu0 %v1083
        %1343 = vmatprep.subr.bf16.mxu0 %v1082
        %1344 = vmatpush2.bf16.msra.mxu0 %v1081
        %1345 = vmatprep.subr.bf16.mxu0 %v1080
        %1346 = vmatpush2.bf16.msra.mxu0 %v1079
        %1347 = vmatprep.subr.bf16.mxu0 %v1078
        %1348 = vmatpush2.bf16.msra.mxu0 %v1077
        %1349 = vmatprep.mubr.bf16.mxu0 %v474
        %1350 = vmatmul.mubr.bf16.gmra.mxu0 %v473
        %v1351 = vpop.f32.mrf.mxu0
        %v1352 = vadd.f32 %v670, %v1351
        %v1353 = vpop.f32.mrf.mxu0
        %v1354 = vadd.f32 %v674, %v1353
        %v1355 = vpop.f32.mrf.mxu0
        %v1356 = vadd.f32 %v670, %v1355
        %v1357 = vpop.f32.mrf.mxu0
        %v1358 = vadd.f32 %v674, %v1357
        %1359 = vmatprep.mubr.bf16.mxu0 %v482
        %1360 = vmatmul.mubr.bf16.gmra.mxu0 %v481
        %v1361 = vpop.f32.mrf.mxu0
        %v1362 = vadd.f32 %v670, %v1361
        %v1363 = vpop.f32.mrf.mxu0
        %v1364 = vadd.f32 %v674, %v1363
        %v1365 = vpop.f32.mrf.mxu0
        %v1366 = vadd.f32 %v670, %v1365
        %v1367 = vpop.f32.mrf.mxu0
        %v1368 = vadd.f32 %v674, %v1367
        %1369 = vmatprep.mubr.bf16.mxu0 %v490
        %1370 = vmatmul.mubr.bf16.gmra.mxu0 %v489
        %v1371 = vpop.f32.mrf.mxu0
        %v1372 = vadd.f32 %v670, %v1371
        %v1373 = vpop.f32.mrf.mxu0
        %v1374 = vadd.f32 %v674, %v1373
        %v1375 = vpop.f32.mrf.mxu0
        %v1376 = vadd.f32 %v670, %v1375
        %v1377 = vpop.f32.mrf.mxu0
        %v1378 = vadd.f32 %v674, %v1377
        %1379 = vmatprep.mubr.bf16.mxu0 %v498
        %1380 = vmatmul.mubr.bf16.gmra.mxu0 %v497
        %v1381 = vpop.f32.mrf.mxu0
        %v1382 = vadd.f32 %v670, %v1381
        %v1383 = vpop.f32.mrf.mxu0
        %v1384 = vadd.f32 %v674, %v1383
        %v1385 = vpop.f32.mrf.mxu0
        %v1386 = vadd.f32 %v670, %v1385
        %v1387 = vpop.f32.mrf.mxu0
        %v1388 = vadd.f32 %v674, %v1387
        %1389 = vmatprep.mubr.bf16.mxu0 %v506
        %1390 = vmatmul.mubr.bf16.gmra.mxu0 %v505
        %v1391 = vpop.f32.mrf.mxu0
        %v1392 = vadd.f32 %v670, %v1391
        %v1393 = vpop.f32.mrf.mxu0
        %v1394 = vadd.f32 %v674, %v1393
        %v1395 = vpop.f32.mrf.mxu0
        %v1396 = vadd.f32 %v670, %v1395
        %v1397 = vpop.f32.mrf.mxu0
        %v1398 = vadd.f32 %v674, %v1397
        %1399 = vmatprep.mubr.bf16.mxu0 %v514
        %1400 = vmatmul.mubr.bf16.gmra.mxu0 %v513
        %v1401 = vpop.f32.mrf.mxu0
        %v1402 = vadd.f32 %v670, %v1401
        %v1403 = vpop.f32.mrf.mxu0
        %v1404 = vadd.f32 %v674, %v1403
        %v1405 = vpop.f32.mrf.mxu0
        %v1406 = vadd.f32 %v670, %v1405
        %v1407 = vpop.f32.mrf.mxu0
        %v1408 = vadd.f32 %v674, %v1407
        %1409 = vmatprep.mubr.bf16.mxu0 %v522
        %1410 = vmatmul.mubr.bf16.gmra.mxu0 %v521
        %v1411 = vpop.f32.mrf.mxu0
        %v1412 = vadd.f32 %v670, %v1411
        %v1413 = vpop.f32.mrf.mxu0
        %v1414 = vadd.f32 %v674, %v1413
        %v1415 = vpop.f32.mrf.mxu0
        %v1416 = vadd.f32 %v670, %v1415
        %v1417 = vpop.f32.mrf.mxu0
        %v1418 = vadd.f32 %v674, %v1417
        %1419 = vmatprep.mubr.bf16.mxu0 %v530
        %1420 = vmatmul.mubr.bf16.gmra.mxu0 %v529
        %v1421 = vpop.f32.mrf.mxu0
        %v1422 = vadd.f32 %v670, %v1421
        %v1423 = vpop.f32.mrf.mxu0
        %v1424 = vadd.f32 %v674, %v1423
        %v1425 = vpop.f32.mrf.mxu0
        %v1426 = vadd.f32 %v670, %v1425
        %v1427 = vpop.f32.mrf.mxu0
        %v1428 = vadd.f32 %v674, %v1427
        %1429 = vdwg.mxu0
        %1430 = vmatprep.subr.bf16.mxu0 %v1108
        %1431 = vmatpush1.bf16.msra.mxu0 %v1107
        %1432 = vmatprep.subr.bf16.mxu0 %v1106
        %1433 = vmatpush1.bf16.msra.mxu0 %v1105
        %1434 = vmatprep.subr.bf16.mxu0 %v1104
        %1435 = vmatpush1.bf16.msra.mxu0 %v1103
        %1436 = vmatprep.subr.bf16.mxu0 %v1102
        %1437 = vmatpush1.bf16.msra.mxu0 %v1101
        %1438 = vmatprep.subr.bf16.mxu0 %v1100
        %1439 = vmatpush1.bf16.msra.mxu0 %v1099
        %1440 = vmatprep.subr.bf16.mxu0 %v1098
        %1441 = vmatpush1.bf16.msra.mxu0 %v1097
        %1442 = vmatprep.subr.bf16.mxu0 %v1096
        %1443 = vmatpush1.bf16.msra.mxu0 %v1095
        %1444 = vmatprep.subr.bf16.mxu0 %v1094
        %1445 = vmatpush1.bf16.msra.mxu0 %v1093
        %1446 = vmatprep.subr.bf16.mxu0 %v1124
        %1447 = vmatpush2.bf16.msra.mxu0 %v1123
        %1448 = vmatprep.subr.bf16.mxu0 %v1122
        %1449 = vmatpush2.bf16.msra.mxu0 %v1121
        %1450 = vmatprep.subr.bf16.mxu0 %v1120
        %1451 = vmatpush2.bf16.msra.mxu0 %v1119
        %1452 = vmatprep.subr.bf16.mxu0 %v1118
        %1453 = vmatpush2.bf16.msra.mxu0 %v1117
        %1454 = vmatprep.subr.bf16.mxu0 %v1116
        %1455 = vmatpush2.bf16.msra.mxu0 %v1115
        %1456 = vmatprep.subr.bf16.mxu0 %v1114
        %1457 = vmatpush2.bf16.msra.mxu0 %v1113
        %1458 = vmatprep.subr.bf16.mxu0 %v1112
        %1459 = vmatpush2.bf16.msra.mxu0 %v1111
        %1460 = vmatprep.subr.bf16.mxu0 %v1110
        %1461 = vmatpush2.bf16.msra.mxu0 %v1109
        %1462 = vmatprep.mubr.bf16.mxu0 %v476
        %1463 = vmatmul.mubr.bf16.gmra.mxu0 %v475
        %v1464 = vpop.f32.mrf.mxu0
        %v1465 = vadd.f32 %v1352, %v1464
        %v1466 = vpop.f32.mrf.mxu0
        %v1467 = vadd.f32 %v1354, %v1466
        %v1468 = vpop.f32.mrf.mxu0
        %v1469 = vadd.f32 %v1356, %v1468
        %v1470 = vpop.f32.mrf.mxu0
        %v1471 = vadd.f32 %v1358, %v1470
        %1472 = vmatprep.mubr.bf16.mxu0 %v484
        %1473 = vmatmul.mubr.bf16.gmra.mxu0 %v483
        %v1474 = vpop.f32.mrf.mxu0
        %v1475 = vadd.f32 %v1362, %v1474
        %v1476 = vpop.f32.mrf.mxu0
        %v1477 = vadd.f32 %v1364, %v1476
        %v1478 = vpop.f32.mrf.mxu0
        %v1479 = vadd.f32 %v1366, %v1478
        %v1480 = vpop.f32.mrf.mxu0
        %v1481 = vadd.f32 %v1368, %v1480
        %1482 = vmatprep.mubr.bf16.mxu0 %v492
        %1483 = vmatmul.mubr.bf16.gmra.mxu0 %v491
        %v1484 = vpop.f32.mrf.mxu0
        %v1485 = vadd.f32 %v1372, %v1484
        %v1486 = vpop.f32.mrf.mxu0
        %v1487 = vadd.f32 %v1374, %v1486
        %v1488 = vpop.f32.mrf.mxu0
        %v1489 = vadd.f32 %v1376, %v1488
        %v1490 = vpop.f32.mrf.mxu0
        %v1491 = vadd.f32 %v1378, %v1490
        %1492 = vmatprep.mubr.bf16.mxu0 %v500
        %1493 = vmatmul.mubr.bf16.gmra.mxu0 %v499
        %v1494 = vpop.f32.mrf.mxu0
        %v1495 = vadd.f32 %v1382, %v1494
        %v1496 = vpop.f32.mrf.mxu0
        %v1497 = vadd.f32 %v1384, %v1496
        %v1498 = vpop.f32.mrf.mxu0
        %v1499 = vadd.f32 %v1386, %v1498
        %v1500 = vpop.f32.mrf.mxu0
        %v1501 = vadd.f32 %v1388, %v1500
        %1502 = vmatprep.mubr.bf16.mxu0 %v508
        %1503 = vmatmul.mubr.bf16.gmra.mxu0 %v507
        %v1504 = vpop.f32.mrf.mxu0
        %v1505 = vadd.f32 %v1392, %v1504
        %v1506 = vpop.f32.mrf.mxu0
        %v1507 = vadd.f32 %v1394, %v1506
        %v1508 = vpop.f32.mrf.mxu0
        %v1509 = vadd.f32 %v1396, %v1508
        %v1510 = vpop.f32.mrf.mxu0
        %v1511 = vadd.f32 %v1398, %v1510
        %1512 = vmatprep.mubr.bf16.mxu0 %v516
        %1513 = vmatmul.mubr.bf16.gmra.mxu0 %v515
        %v1514 = vpop.f32.mrf.mxu0
        %v1515 = vadd.f32 %v1402, %v1514
        %v1516 = vpop.f32.mrf.mxu0
        %v1517 = vadd.f32 %v1404, %v1516
        %v1518 = vpop.f32.mrf.mxu0
        %v1519 = vadd.f32 %v1406, %v1518
        %v1520 = vpop.f32.mrf.mxu0
        %v1521 = vadd.f32 %v1408, %v1520
        %1522 = vmatprep.mubr.bf16.mxu0 %v524
        %1523 = vmatmul.mubr.bf16.gmra.mxu0 %v523
        %v1524 = vpop.f32.mrf.mxu0
        %v1525 = vadd.f32 %v1412, %v1524
        %v1526 = vpop.f32.mrf.mxu0
        %v1527 = vadd.f32 %v1414, %v1526
        %v1528 = vpop.f32.mrf.mxu0
        %v1529 = vadd.f32 %v1416, %v1528
        %v1530 = vpop.f32.mrf.mxu0
        %v1531 = vadd.f32 %v1418, %v1530
        %1532 = vmatprep.mubr.bf16.mxu0 %v532
        %1533 = vmatmul.mubr.bf16.gmra.mxu0 %v531
        %v1534 = vpop.f32.mrf.mxu0
        %v1535 = vadd.f32 %v1422, %v1534
        %v1536 = vpop.f32.mrf.mxu0
        %v1537 = vadd.f32 %v1424, %v1536
        %v1538 = vpop.f32.mrf.mxu0
        %v1539 = vadd.f32 %v1426, %v1538
        %v1540 = vpop.f32.mrf.mxu0
        %v1541 = vadd.f32 %v1428, %v1540
        %1542 = vdwg.mxu0
        %1543 = vmatprep.subr.bf16.mxu0 %v1140
        %1544 = vmatpush1.bf16.msra.mxu0 %v1139
        %1545 = vmatprep.subr.bf16.mxu0 %v1138
        %1546 = vmatpush1.bf16.msra.mxu0 %v1137
        %1547 = vmatprep.subr.bf16.mxu0 %v1136
        %1548 = vmatpush1.bf16.msra.mxu0 %v1135
        %1549 = vmatprep.subr.bf16.mxu0 %v1134
        %1550 = vmatpush1.bf16.msra.mxu0 %v1133
        %1551 = vmatprep.subr.bf16.mxu0 %v1132
        %1552 = vmatpush1.bf16.msra.mxu0 %v1131
        %1553 = vmatprep.subr.bf16.mxu0 %v1130
        %1554 = vmatpush1.bf16.msra.mxu0 %v1129
        %1555 = vmatprep.subr.bf16.mxu0 %v1128
        %1556 = vmatpush1.bf16.msra.mxu0 %v1127
        %1557 = vmatprep.subr.bf16.mxu0 %v1126
        %1558 = vmatpush1.bf16.msra.mxu0 %v1125
        %1559 = vmatprep.subr.bf16.mxu0 %v1156
        %1560 = vmatpush2.bf16.msra.mxu0 %v1155
        %1561 = vmatprep.subr.bf16.mxu0 %v1154
        %1562 = vmatpush2.bf16.msra.mxu0 %v1153
        %1563 = vmatprep.subr.bf16.mxu0 %v1152
        %1564 = vmatpush2.bf16.msra.mxu0 %v1151
        %1565 = vmatprep.subr.bf16.mxu0 %v1150
        %1566 = vmatpush2.bf16.msra.mxu0 %v1149
        %1567 = vmatprep.subr.bf16.mxu0 %v1148
        %1568 = vmatpush2.bf16.msra.mxu0 %v1147
        %1569 = vmatprep.subr.bf16.mxu0 %v1146
        %1570 = vmatpush2.bf16.msra.mxu0 %v1145
        %1571 = vmatprep.subr.bf16.mxu0 %v1144
        %1572 = vmatpush2.bf16.msra.mxu0 %v1143
        %1573 = vmatprep.subr.bf16.mxu0 %v1142
        %1574 = vmatpush2.bf16.msra.mxu0 %v1141
        %1575 = vmatprep.mubr.bf16.mxu0 %v478
        %1576 = vmatmul.mubr.bf16.gmra.mxu0 %v477
        %v1577 = vpop.f32.mrf.mxu0
        %v1578 = vadd.f32 %v1465, %v1577
        %v1579 = vpop.f32.mrf.mxu0
        %v1580 = vadd.f32 %v1467, %v1579
        %v1581 = vpop.f32.mrf.mxu0
        %v1582 = vadd.f32 %v1469, %v1581
        %v1583 = vpop.f32.mrf.mxu0
        %v1584 = vadd.f32 %v1471, %v1583
        %1585 = vmatprep.mubr.bf16.mxu0 %v486
        %1586 = vmatmul.mubr.bf16.gmra.mxu0 %v485
        %v1587 = vpop.f32.mrf.mxu0
        %v1588 = vadd.f32 %v1475, %v1587
        %v1589 = vpop.f32.mrf.mxu0
        %v1590 = vadd.f32 %v1477, %v1589
        %v1591 = vpop.f32.mrf.mxu0
        %v1592 = vadd.f32 %v1479, %v1591
        %v1593 = vpop.f32.mrf.mxu0
        %v1594 = vadd.f32 %v1481, %v1593
        %1595 = vmatprep.mubr.bf16.mxu0 %v494
        %1596 = vmatmul.mubr.bf16.gmra.mxu0 %v493
        %v1597 = vpop.f32.mrf.mxu0
        %v1598 = vadd.f32 %v1485, %v1597
        %v1599 = vpop.f32.mrf.mxu0
        %v1600 = vadd.f32 %v1487, %v1599
        %v1601 = vpop.f32.mrf.mxu0
        %v1602 = vadd.f32 %v1489, %v1601
        %v1603 = vpop.f32.mrf.mxu0
        %v1604 = vadd.f32 %v1491, %v1603
        %1605 = vmatprep.mubr.bf16.mxu0 %v502
        %1606 = vmatmul.mubr.bf16.gmra.mxu0 %v501
        %v1607 = vpop.f32.mrf.mxu0
        %v1608 = vadd.f32 %v1495, %v1607
        %v1609 = vpop.f32.mrf.mxu0
        %v1610 = vadd.f32 %v1497, %v1609
        %v1611 = vpop.f32.mrf.mxu0
        %v1612 = vadd.f32 %v1499, %v1611
        %v1613 = vpop.f32.mrf.mxu0
        %v1614 = vadd.f32 %v1501, %v1613
        %1615 = vmatprep.mubr.bf16.mxu0 %v510
        %1616 = vmatmul.mubr.bf16.gmra.mxu0 %v509
        %v1617 = vpop.f32.mrf.mxu0
        %v1618 = vadd.f32 %v1505, %v1617
        %v1619 = vpop.f32.mrf.mxu0
        %v1620 = vadd.f32 %v1507, %v1619
        %v1621 = vpop.f32.mrf.mxu0
        %v1622 = vadd.f32 %v1509, %v1621
        %v1623 = vpop.f32.mrf.mxu0
        %v1624 = vadd.f32 %v1511, %v1623
        %1625 = vmatprep.mubr.bf16.mxu0 %v518
        %1626 = vmatmul.mubr.bf16.gmra.mxu0 %v517
        %v1627 = vpop.f32.mrf.mxu0
        %v1628 = vadd.f32 %v1515, %v1627
        %v1629 = vpop.f32.mrf.mxu0
        %v1630 = vadd.f32 %v1517, %v1629
        %v1631 = vpop.f32.mrf.mxu0
        %v1632 = vadd.f32 %v1519, %v1631
        %v1633 = vpop.f32.mrf.mxu0
        %v1634 = vadd.f32 %v1521, %v1633
        %1635 = vmatprep.mubr.bf16.mxu0 %v526
        %1636 = vmatmul.mubr.bf16.gmra.mxu0 %v525
        %v1637 = vpop.f32.mrf.mxu0
        %v1638 = vadd.f32 %v1525, %v1637
        %v1639 = vpop.f32.mrf.mxu0
        %v1640 = vadd.f32 %v1527, %v1639
        %v1641 = vpop.f32.mrf.mxu0
        %v1642 = vadd.f32 %v1529, %v1641
        %v1643 = vpop.f32.mrf.mxu0
        %v1644 = vadd.f32 %v1531, %v1643
        %1645 = vmatprep.mubr.bf16.mxu0 %v534
        %1646 = vmatmul.mubr.bf16.gmra.mxu0 %v533
        %v1647 = vpop.f32.mrf.mxu0
        %v1648 = vadd.f32 %v1535, %v1647
        %v1649 = vpop.f32.mrf.mxu0
        %v1650 = vadd.f32 %v1537, %v1649
        %v1651 = vpop.f32.mrf.mxu0
        %v1652 = vadd.f32 %v1539, %v1651
        %v1653 = vpop.f32.mrf.mxu0
        %v1654 = vadd.f32 %v1541, %v1653
        %1655 = vdwg.mxu0
        %1656 = vmatprep.subr.bf16.mxu0 %v1172
        %1657 = vmatpush1.bf16.msra.mxu0 %v1171
        %1658 = vmatprep.subr.bf16.mxu0 %v1170
        %1659 = vmatpush1.bf16.msra.mxu0 %v1169
        %1660 = vmatprep.subr.bf16.mxu0 %v1168
        %1661 = vmatpush1.bf16.msra.mxu0 %v1167
        %1662 = vmatprep.subr.bf16.mxu0 %v1166
        %1663 = vmatpush1.bf16.msra.mxu0 %v1165
        %1664 = vmatprep.subr.bf16.mxu0 %v1164
        %1665 = vmatpush1.bf16.msra.mxu0 %v1163
        %1666 = vmatprep.subr.bf16.mxu0 %v1162
        %1667 = vmatpush1.bf16.msra.mxu0 %v1161
        %1668 = vmatprep.subr.bf16.mxu0 %v1160
        %1669 = vmatpush1.bf16.msra.mxu0 %v1159
        %1670 = vmatprep.subr.bf16.mxu0 %v1158
        %1671 = vmatpush1.bf16.msra.mxu0 %v1157
        %1672 = vmatprep.subr.bf16.mxu0 %v1188
        %1673 = vmatpush2.bf16.msra.mxu0 %v1187
        %1674 = vmatprep.subr.bf16.mxu0 %v1186
        %1675 = vmatpush2.bf16.msra.mxu0 %v1185
        %1676 = vmatprep.subr.bf16.mxu0 %v1184
        %1677 = vmatpush2.bf16.msra.mxu0 %v1183
        %1678 = vmatprep.subr.bf16.mxu0 %v1182
        %1679 = vmatpush2.bf16.msra.mxu0 %v1181
        %1680 = vmatprep.subr.bf16.mxu0 %v1180
        %1681 = vmatpush2.bf16.msra.mxu0 %v1179
        %1682 = vmatprep.subr.bf16.mxu0 %v1178
        %1683 = vmatpush2.bf16.msra.mxu0 %v1177
        %1684 = vmatprep.subr.bf16.mxu0 %v1176
        %1685 = vmatpush2.bf16.msra.mxu0 %v1175
        %1686 = vmatprep.subr.bf16.mxu0 %v1174
        %1687 = vmatpush2.bf16.msra.mxu0 %v1173
        %1688 = vmatprep.mubr.bf16.mxu0 %v480
        %1689 = vmatmul.mubr.bf16.gmra.mxu0 %v479
        %v1690 = vpop.f32.mrf.mxu0
        %v1691 = vadd.f32 %v1578, %v1690
        %v1692 = vpop.f32.mrf.mxu0
        %v1693 = vadd.f32 %v1580, %v1692
        %v1694 = vpop.f32.mrf.mxu0
        %v1695 = vadd.f32 %v1582, %v1694
        %v1696 = vpop.f32.mrf.mxu0
        %v1697 = vadd.f32 %v1584, %v1696
        %1698 = vmatprep.mubr.bf16.mxu0 %v488
        %1699 = vmatmul.mubr.bf16.gmra.mxu0 %v487
        %v1700 = vpop.f32.mrf.mxu0
        %v1701 = vadd.f32 %v1588, %v1700
        %v1702 = vpop.f32.mrf.mxu0
        %v1703 = vadd.f32 %v1590, %v1702
        %v1704 = vpop.f32.mrf.mxu0
        %v1705 = vadd.f32 %v1592, %v1704
        %v1706 = vpop.f32.mrf.mxu0
        %v1707 = vadd.f32 %v1594, %v1706
        %1708 = vmatprep.mubr.bf16.mxu0 %v496
        %1709 = vmatmul.mubr.bf16.gmra.mxu0 %v495
        %v1710 = vpop.f32.mrf.mxu0
        %v1711 = vadd.f32 %v1598, %v1710
        %v1712 = vpop.f32.mrf.mxu0
        %v1713 = vadd.f32 %v1600, %v1712
        %v1714 = vpop.f32.mrf.mxu0
        %v1715 = vadd.f32 %v1602, %v1714
        %v1716 = vpop.f32.mrf.mxu0
        %v1717 = vadd.f32 %v1604, %v1716
        %1718 = vmatprep.mubr.bf16.mxu0 %v504
        %1719 = vmatmul.mubr.bf16.gmra.mxu0 %v503
        %v1720 = vpop.f32.mrf.mxu0
        %v1721 = vadd.f32 %v1608, %v1720
        %v1722 = vpop.f32.mrf.mxu0
        %v1723 = vadd.f32 %v1610, %v1722
        %v1724 = vpop.f32.mrf.mxu0
        %v1725 = vadd.f32 %v1612, %v1724
        %v1726 = vpop.f32.mrf.mxu0
        %v1727 = vadd.f32 %v1614, %v1726
        %1728 = vmatprep.mubr.bf16.mxu0 %v512
        %1729 = vmatmul.mubr.bf16.gmra.mxu0 %v511
        %v1730 = vpop.f32.mrf.mxu0
        %v1731 = vadd.f32 %v1618, %v1730
        %v1732 = vpop.f32.mrf.mxu0
        %v1733 = vadd.f32 %v1620, %v1732
        %v1734 = vpop.f32.mrf.mxu0
        %v1735 = vadd.f32 %v1622, %v1734
        %v1736 = vpop.f32.mrf.mxu0
        %v1737 = vadd.f32 %v1624, %v1736
        %1738 = vmatprep.mubr.bf16.mxu0 %v520
        %1739 = vmatmul.mubr.bf16.gmra.mxu0 %v519
        %v1740 = vpop.f32.mrf.mxu0
        %v1741 = vadd.f32 %v1628, %v1740
        %v1742 = vpop.f32.mrf.mxu0
        %v1743 = vadd.f32 %v1630, %v1742
        %v1744 = vpop.f32.mrf.mxu0
        %v1745 = vadd.f32 %v1632, %v1744
        %v1746 = vpop.f32.mrf.mxu0
        %v1747 = vadd.f32 %v1634, %v1746
        %1748 = vmatprep.mubr.bf16.mxu0 %v528
        %1749 = vmatmul.mubr.bf16.gmra.mxu0 %v527
        %v1750 = vpop.f32.mrf.mxu0
        %v1751 = vadd.f32 %v1638, %v1750
        %v1752 = vpop.f32.mrf.mxu0
        %v1753 = vadd.f32 %v1640, %v1752
        %v1754 = vpop.f32.mrf.mxu0
        %v1755 = vadd.f32 %v1642, %v1754
        %v1756 = vpop.f32.mrf.mxu0
        %v1757 = vadd.f32 %v1644, %v1756
        %1758 = vmatprep.mubr.bf16.mxu0 %v536
        %1759 = vmatmul.mubr.bf16.gmra.mxu0 %v535
        %v1760 = vpop.f32.mrf.mxu0
        %v1761 = vadd.f32 %v1648, %v1760
        %v1762 = vpop.f32.mrf.mxu0
        %v1763 = vadd.f32 %v1650, %v1762
        %v1764 = vpop.f32.mrf.mxu0
        %v1765 = vadd.f32 %v1652, %v1764
        %v1766 = vpop.f32.mrf.mxu0
        %v1767 = vadd.f32 %v1654, %v1766
        %1768 = vdwg.mxu0
        %v1769 = vmax.f32 %v1691, 0.0
        %v1770 = vmax.f32 %v1693, 0.0
        %v1771 = vmax.f32 %v1695, 0.0
        %v1772 = vmax.f32 %v1697, 0.0
        %v1773 = vmax.f32 %v1701, 0.0
        %v1774 = vmax.f32 %v1703, 0.0
        %v1775 = vmax.f32 %v1705, 0.0
        %v1776 = vmax.f32 %v1707, 0.0
        %v1777 = vmax.f32 %v1711, 0.0
        %v1778 = vmax.f32 %v1713, 0.0
        %v1779 = vmax.f32 %v1715, 0.0
        %v1780 = vmax.f32 %v1717, 0.0
        %v1781 = vmax.f32 %v1721, 0.0
        %v1782 = vmax.f32 %v1723, 0.0
        %v1783 = vmax.f32 %v1725, 0.0
        %v1784 = vmax.f32 %v1727, 0.0
        %v1785 = vmax.f32 %v1731, 0.0
        %v1786 = vmax.f32 %v1733, 0.0
        %v1787 = vmax.f32 %v1735, 0.0
        %v1788 = vmax.f32 %v1737, 0.0
        %v1789 = vmax.f32 %v1741, 0.0
        %v1790 = vmax.f32 %v1743, 0.0
        %v1791 = vmax.f32 %v1745, 0.0
        %v1792 = vmax.f32 %v1747, 0.0
        %v1793 = vmax.f32 %v1751, 0.0
        %v1794 = vmax.f32 %v1753, 0.0
        %v1795 = vmax.f32 %v1755, 0.0
        %v1796 = vmax.f32 %v1757, 0.0
        %v1797 = vmax.f32 %v1761, 0.0
        %v1798 = vmax.f32 %v1763, 0.0
        %v1799 = vmax.f32 %v1765, 0.0
        %v1800 = vmax.f32 %v1767, 0.0
        %v1801 = vpack.c.bf16 %v1771, %v1769
        %v1802 = vpack.c.bf16 %v1772, %v1770
        %v1803 = vpack.c.bf16 %v1775, %v1773
        %v1804 = vpack.c.bf16 %v1776, %v1774
        %v1805 = vpack.c.bf16 %v1779, %v1777
        %v1806 = vpack.c.bf16 %v1780, %v1778
        %v1807 = vpack.c.bf16 %v1783, %v1781
        %v1808 = vpack.c.bf16 %v1784, %v1782
        %v1809 = vpack.c.bf16 %v1787, %v1785
        %v1810 = vpack.c.bf16 %v1788, %v1786
        %v1811 = vpack.c.bf16 %v1791, %v1789
        %v1812 = vpack.c.bf16 %v1792, %v1790
        %v1813 = vpack.c.bf16 %v1795, %v1793
        %v1814 = vpack.c.bf16 %v1796, %v1794
        %v1815 = vpack.c.bf16 %v1799, %v1797
        %v1816 = vpack.c.bf16 %v1800, %v1798
        %v1817 = vld [vmem:[#allocation7] sm:$0xf]
        %v1818 = vld [vmem:[#allocation7 + $0x4] sm:$0xf]
        %v1819 = vld [vmem:[#allocation7 + $0x8] sm:$0xf]
        %v1820 = vld [vmem:[#allocation7 + $0xc] sm:$0xf]
        %v1821 = vld [vmem:[#allocation7 + $0x10] sm:$0xf]
        %v1822 = vld [vmem:[#allocation7 + $0x14] sm:$0xf]
        %v1823 = vld [vmem:[#allocation7 + $0x18] sm:$0xf]
        %v1824 = vld [vmem:[#allocation7 + $0x1c] sm:$0xf]
        %v1825 = vld [vmem:[#allocation7 + $0x20] sm:$0xf]
        %v1826 = vld [vmem:[#allocation7 + $0x24] sm:$0xf]
        %v1827 = vld [vmem:[#allocation7 + $0x28] sm:$0xf]
        %v1828 = vld [vmem:[#allocation7 + $0x2c] sm:$0xf]
        %v1829 = vld [vmem:[#allocation7 + $0x30] sm:$0xf]
        %v1830 = vld [vmem:[#allocation7 + $0x34] sm:$0xf]
        %v1831 = vld [vmem:[#allocation7 + $0x38] sm:$0xf]
        %v1832 = vld [vmem:[#allocation7 + $0x3c] sm:$0xf]
        %v1833 = vld [vmem:[#allocation7 + $0x40] sm:$0xf]
        %v1834 = vld [vmem:[#allocation7 + $0x44] sm:$0xf]
        %v1835 = vld [vmem:[#allocation7 + $0x48] sm:$0xf]
        %v1836 = vld [vmem:[#allocation7 + $0x4c] sm:$0xf]
        %v1837 = vld [vmem:[#allocation7 + $0x50] sm:$0xf]
        %v1838 = vld [vmem:[#allocation7 + $0x54] sm:$0xf]
        %v1839 = vld [vmem:[#allocation7 + $0x58] sm:$0xf]
        %v1840 = vld [vmem:[#allocation7 + $0x5c] sm:$0xf]
        %v1841 = vld [vmem:[#allocation7 + $0x60] sm:$0xf]
        %v1842 = vld [vmem:[#allocation7 + $0x64] sm:$0xf]
        %v1843 = vld [vmem:[#allocation7 + $0x68] sm:$0xf]
        %v1844 = vld [vmem:[#allocation7 + $0x6c] sm:$0xf]
        %v1845 = vld [vmem:[#allocation7 + $0x70] sm:$0xf]
        %v1846 = vld [vmem:[#allocation7 + $0x74] sm:$0xf]
        %v1847 = vld [vmem:[#allocation7 + $0x78] sm:$0xf]
        %v1848 = vld [vmem:[#allocation7 + $0x7c] sm:$0xf]
        %v1849 = vld [vmem:[%s4] sm:$0x1]
        %v1851 = vlaneseq
        %v1852 = vshrl.u32 %v1851, 7
        %v1853 = vsub.s32 0, %v1852
        %v1854 = vrot.slane %v1849, %v1853
        %v1888 = vunpack.c.l.b16 %v1817
        %v1889 = vunpack.c.l.b16 %v1818
        %v1890 = vunpack.c.l.b16 %v1819
        %v1891 = vunpack.c.l.b16 %v1820
        %v1892 = vunpack.c.l.b16 %v1821
        %v1893 = vunpack.c.l.b16 %v1822
        %v1894 = vunpack.c.l.b16 %v1823
        %v1895 = vunpack.c.l.b16 %v1824
        %v1896 = vunpack.c.l.b16 %v1825
        %v1897 = vunpack.c.l.b16 %v1826
        %v1898 = vunpack.c.l.b16 %v1827
        %v1899 = vunpack.c.l.b16 %v1828
        %v1900 = vunpack.c.l.b16 %v1829
        %v1901 = vunpack.c.l.b16 %v1830
        %v1902 = vunpack.c.l.b16 %v1831
        %v1903 = vunpack.c.l.b16 %v1832
        %v1904 = vunpack.c.l.b16 %v1833
        %v1905 = vunpack.c.l.b16 %v1834
        %v1906 = vunpack.c.l.b16 %v1835
        %v1907 = vunpack.c.l.b16 %v1836
        %v1908 = vunpack.c.l.b16 %v1837
        %v1909 = vunpack.c.l.b16 %v1838
        %v1910 = vunpack.c.l.b16 %v1839
        %v1911 = vunpack.c.l.b16 %v1840
        %v1912 = vunpack.c.l.b16 %v1841
        %v1913 = vunpack.c.l.b16 %v1842
        %v1914 = vunpack.c.l.b16 %v1843
        %v1915 = vunpack.c.l.b16 %v1844
        %v1916 = vunpack.c.l.b16 %v1845
        %v1917 = vunpack.c.l.b16 %v1846
        %v1918 = vunpack.c.l.b16 %v1847
        %v1919 = vunpack.c.l.b16 %v1848
        %v1920 = vpack.c.b16 %v1889, %v1888
        %v1921 = vpack.c.b16 %v1891, %v1890
        %v1922 = vpack.c.b16 %v1893, %v1892
        %v1923 = vpack.c.b16 %v1895, %v1894
        %v1924 = vpack.c.b16 %v1897, %v1896
        %v1925 = vpack.c.b16 %v1899, %v1898
        %v1926 = vpack.c.b16 %v1901, %v1900
        %v1927 = vpack.c.b16 %v1903, %v1902
        %v1928 = vpack.c.b16 %v1905, %v1904
        %v1929 = vpack.c.b16 %v1907, %v1906
        %v1930 = vpack.c.b16 %v1909, %v1908
        %v1931 = vpack.c.b16 %v1911, %v1910
        %v1932 = vpack.c.b16 %v1913, %v1912
        %v1933 = vpack.c.b16 %v1915, %v1914
        %v1934 = vpack.c.b16 %v1917, %v1916
        %v1935 = vpack.c.b16 %v1919, %v1918
        %1952 = vmatprep.subr.bf16.mxu0 0
        %1953 = vmatpush1.bf16.msra.mxu0 %v1927
        %1954 = vmatprep.subr.bf16.mxu0 0
        %1955 = vmatpush1.bf16.msra.mxu0 %v1926
        %1956 = vmatprep.subr.bf16.mxu0 0
        %1957 = vmatpush1.bf16.msra.mxu0 %v1925
        %1958 = vmatprep.subr.bf16.mxu0 0
        %1959 = vmatpush1.bf16.msra.mxu0 %v1924
        %1960 = vmatprep.subr.bf16.mxu0 0
        %1961 = vmatpush1.bf16.msra.mxu0 %v1923
        %1962 = vmatprep.subr.bf16.mxu0 0
        %1963 = vmatpush1.bf16.msra.mxu0 %v1922
        %1964 = vmatprep.subr.bf16.mxu0 0
        %1965 = vmatpush1.bf16.msra.mxu0 %v1921
        %1966 = vmatprep.subr.bf16.mxu0 0
        %1967 = vmatpush1.bf16.msra.mxu0 %v1920
        %1968 = vmatprep.subr.bf16.mxu0 0
        %1969 = vmatpush2.bf16.msra.mxu0 %v1935
        %1970 = vmatprep.subr.bf16.mxu0 0
        %1971 = vmatpush2.bf16.msra.mxu0 %v1934
        %1972 = vmatprep.subr.bf16.mxu0 0
        %1973 = vmatpush2.bf16.msra.mxu0 %v1933
        %1974 = vmatprep.subr.bf16.mxu0 0
        %1975 = vmatpush2.bf16.msra.mxu0 %v1932
        %1976 = vmatprep.subr.bf16.mxu0 0
        %1977 = vmatpush2.bf16.msra.mxu0 %v1931
        %1978 = vmatprep.subr.bf16.mxu0 0
        %1979 = vmatpush2.bf16.msra.mxu0 %v1930
        %1980 = vmatprep.subr.bf16.mxu0 0
        %1981 = vmatpush2.bf16.msra.mxu0 %v1929
        %1982 = vmatprep.subr.bf16.mxu0 0
        %1983 = vmatpush2.bf16.msra.mxu0 %v1928
        %1984 = vmatprep.mubr.bf16.mxu0 %v1802
        %1985 = vmatmul.mubr.bf16.gmra.mxu0 %v1801
        %v1986 = vpop.f32.mrf.mxu0
        %v1987 = vadd.f32 %v1854, %v1986
        %v1988 = vpop.f32.mrf.mxu0
        %v1989 = vpop.f32.mrf.mxu0
        %v1990 = vadd.f32 %v1854, %v1989
        %v1991 = vpop.f32.mrf.mxu0
        %1992 = vmatprep.mubr.bf16.mxu0 %v1804
        %1993 = vmatmul.mubr.bf16.gmra.mxu0 %v1803
        %v1994 = vpop.f32.mrf.mxu0
        %v1995 = vadd.f32 %v1854, %v1994
        %v1996 = vpop.f32.mrf.mxu0
        %v1997 = vpop.f32.mrf.mxu0
        %v1998 = vadd.f32 %v1854, %v1997
        %v1999 = vpop.f32.mrf.mxu0
        %2000 = vmatprep.mubr.bf16.mxu0 %v1806
        %2001 = vmatmul.mubr.bf16.gmra.mxu0 %v1805
        %v2002 = vpop.f32.mrf.mxu0
        %v2003 = vadd.f32 %v1854, %v2002
        %v2004 = vpop.f32.mrf.mxu0
        %v2005 = vpop.f32.mrf.mxu0
        %v2006 = vadd.f32 %v1854, %v2005
        %v2007 = vpop.f32.mrf.mxu0
        %2008 = vmatprep.mubr.bf16.mxu0 %v1808
        %2009 = vmatmul.mubr.bf16.gmra.mxu0 %v1807
        %v2010 = vpop.f32.mrf.mxu0
        %v2011 = vadd.f32 %v1854, %v2010
        %v2012 = vpop.f32.mrf.mxu0
        %v2013 = vpop.f32.mrf.mxu0
        %v2014 = vadd.f32 %v1854, %v2013
        %v2015 = vpop.f32.mrf.mxu0
        %2016 = vmatprep.mubr.bf16.mxu0 %v1810
        %2017 = vmatmul.mubr.bf16.gmra.mxu0 %v1809
        %v2018 = vpop.f32.mrf.mxu0
        %v2019 = vadd.f32 %v1854, %v2018
        %v2020 = vpop.f32.mrf.mxu0
        %v2021 = vpop.f32.mrf.mxu0
        %v2022 = vadd.f32 %v1854, %v2021
        %v2023 = vpop.f32.mrf.mxu0
        %2024 = vmatprep.mubr.bf16.mxu0 %v1812
        %2025 = vmatmul.mubr.bf16.gmra.mxu0 %v1811
        %v2026 = vpop.f32.mrf.mxu0
        %v2027 = vadd.f32 %v1854, %v2026
        %v2028 = vpop.f32.mrf.mxu0
        %v2029 = vpop.f32.mrf.mxu0
        %v2030 = vadd.f32 %v1854, %v2029
        %v2031 = vpop.f32.mrf.mxu0
        %2032 = vmatprep.mubr.bf16.mxu0 %v1814
        %2033 = vmatmul.mubr.bf16.gmra.mxu0 %v1813
        %v2034 = vpop.f32.mrf.mxu0
        %v2035 = vadd.f32 %v1854, %v2034
        %v2036 = vpop.f32.mrf.mxu0
        %v2037 = vpop.f32.mrf.mxu0
        %v2038 = vadd.f32 %v1854, %v2037
        %v2039 = vpop.f32.mrf.mxu0
        %2040 = vmatprep.mubr.bf16.mxu0 %v1816
        %2041 = vmatmul.mubr.bf16.gmra.mxu0 %v1815
        %v2042 = vpop.f32.mrf.mxu0
        %v2043 = vadd.f32 %v1854, %v2042
        %v2044 = vpop.f32.mrf.mxu0
        %v2045 = vpop.f32.mrf.mxu0
        %v2046 = vadd.f32 %v1854, %v2045
        %v2047 = vpop.f32.mrf.mxu0
        %2048 = vdwg.mxu0
        %v2049 = vmax.f32 %v1987, 0.0
        %v2050 = vmax.f32 %v1990, 0.0
        %v2051 = vmax.f32 %v1995, 0.0
        %v2052 = vmax.f32 %v1998, 0.0
        %v2053 = vmax.f32 %v2003, 0.0
        %v2054 = vmax.f32 %v2006, 0.0
        %v2055 = vmax.f32 %v2011, 0.0
        %v2056 = vmax.f32 %v2014, 0.0
        %v2057 = vmax.f32 %v2019, 0.0
        %v2058 = vmax.f32 %v2022, 0.0
        %v2059 = vmax.f32 %v2027, 0.0
        %v2060 = vmax.f32 %v2030, 0.0
        %v2061 = vmax.f32 %v2035, 0.0
        %v2062 = vmax.f32 %v2038, 0.0
        %v2063 = vmax.f32 %v2043, 0.0
        %v2064 = vmax.f32 %v2046, 0.0
        %v2065 = vpack.c.bf16 %v2050, %v2049
        %v2066 = vpack.c.bf16 %v2052, %v2051
        %v2067 = vpack.c.bf16 %v2054, %v2053
        %v2068 = vpack.c.bf16 %v2056, %v2055
        %v2069 = vpack.c.bf16 %v2058, %v2057
        %v2070 = vpack.c.bf16 %v2060, %v2059
        %v2071 = vpack.c.bf16 %v2062, %v2061
        %v2072 = vpack.c.bf16 %v2064, %v2063
        %v2073 = vld [vmem:[#allocation8] sm:$0xf]
        %v2074 = vld [vmem:[#allocation8 + $0x4] sm:$0xf]
        %v2075 = vld [vmem:[#allocation8 + $0x8] sm:$0xf]
        %v2076 = vld [vmem:[#allocation8 + $0xc] sm:$0xf]
        %v2077 = vld [vmem:[#allocation8 + $0x10] sm:$0xf]
        %v2078 = vld [vmem:[#allocation8 + $0x14] sm:$0xf]
        %v2079 = vld [vmem:[#allocation8 + $0x18] sm:$0xf]
        %v2080 = vld [vmem:[#allocation8 + $0x1c] sm:$0xf]
        %v2081 = vld [vmem:[#allocation8 + $0x20] sm:$0xf]
        %v2082 = vld [vmem:[#allocation8 + $0x24] sm:$0xf]
        %v2083 = vld [vmem:[#allocation8 + $0x28] sm:$0xf]
        %v2084 = vld [vmem:[#allocation8 + $0x2c] sm:$0xf]
        %v2085 = vld [vmem:[#allocation8 + $0x30] sm:$0xf]
        %v2086 = vld [vmem:[#allocation8 + $0x34] sm:$0xf]
        %v2087 = vld [vmem:[#allocation8 + $0x38] sm:$0xf]
        %v2088 = vld [vmem:[#allocation8 + $0x3c] sm:$0xf]
        %v2089 = vld [vmem:[%s6] sm:$0x1]
        %v2091 = vlaneseq
        %v2092 = vshrl.u32 %v2091, 7
        %v2093 = vsub.s32 0, %v2092
        %v2094 = vrot.slane %v2089, %v2093
        %v2112 = vunpack.c.l.b16 %v2073
        %v2113 = vunpack.c.l.b16 %v2074
        %v2114 = vunpack.c.l.b16 %v2075
        %v2115 = vunpack.c.l.b16 %v2076
        %v2116 = vunpack.c.l.b16 %v2077
        %v2117 = vunpack.c.l.b16 %v2078
        %v2118 = vunpack.c.l.b16 %v2079
        %v2119 = vunpack.c.l.b16 %v2080
        %v2120 = vunpack.c.l.b16 %v2081
        %v2121 = vunpack.c.l.b16 %v2082
        %v2122 = vunpack.c.l.b16 %v2083
        %v2123 = vunpack.c.l.b16 %v2084
        %v2124 = vunpack.c.l.b16 %v2085
        %v2125 = vunpack.c.l.b16 %v2086
        %v2126 = vunpack.c.l.b16 %v2087
        %v2127 = vunpack.c.l.b16 %v2088
        %v2128 = vpack.c.b16 %v2113, %v2112
        %v2129 = vpack.c.b16 %v2115, %v2114
        %v2130 = vpack.c.b16 %v2117, %v2116
        %v2131 = vpack.c.b16 %v2119, %v2118
        %v2132 = vpack.c.b16 %v2121, %v2120
        %v2133 = vpack.c.b16 %v2123, %v2122
        %v2134 = vpack.c.b16 %v2125, %v2124
        %v2135 = vpack.c.b16 %v2127, %v2126
        %2144 = vmatprep.subr.bf16.mxu0 0
        %2145 = vmatpush1.bf16.msra.mxu0 %v2135
        %2146 = vmatprep.subr.bf16.mxu0 0
        %2147 = vmatpush1.bf16.msra.mxu0 %v2134
        %2148 = vmatprep.subr.bf16.mxu0 0
        %2149 = vmatpush1.bf16.msra.mxu0 %v2133
        %2150 = vmatprep.subr.bf16.mxu0 0
        %2151 = vmatpush1.bf16.msra.mxu0 %v2132
        %2152 = vmatprep.subr.bf16.mxu0 0
        %2153 = vmatpush1.bf16.msra.mxu0 %v2131
        %2154 = vmatprep.subr.bf16.mxu0 0
        %2155 = vmatpush1.bf16.msra.mxu0 %v2130
        %2156 = vmatprep.subr.bf16.mxu0 0
        %2157 = vmatpush1.bf16.msra.mxu0 %v2129
        %2158 = vmatprep.subr.bf16.mxu0 0
        %2159 = vmatpush1.bf16.msra.mxu0 %v2128
        %2160 = vmatprep.subr.bf16.mxu0 0
        %2161 = vmatpush2.bf16.msra.mxu0 0
        %2162 = vmatprep.subr.bf16.mxu0 0
        %2163 = vmatpush2.bf16.msra.mxu0 0
        %2164 = vmatprep.subr.bf16.mxu0 0
        %2165 = vmatpush2.bf16.msra.mxu0 0
        %2166 = vmatprep.subr.bf16.mxu0 0
        %2167 = vmatpush2.bf16.msra.mxu0 0
        %2168 = vmatprep.subr.bf16.mxu0 0
        %2169 = vmatpush2.bf16.msra.mxu0 0
        %2170 = vmatprep.subr.bf16.mxu0 0
        %2171 = vmatpush2.bf16.msra.mxu0 0
        %2172 = vmatprep.subr.bf16.mxu0 0
        %2173 = vmatpush2.bf16.msra.mxu0 0
        %2174 = vmatprep.subr.bf16.mxu0 0
        %2175 = vmatpush2.bf16.msra.mxu0 0
        %2176 = vmatprep.mubr.bf16.mxu0 0
        %2177 = vmatmul.mubr.bf16.gmra.mxu0 %v2065
        %v2178 = vpop.f32.mrf.mxu0
        %v2179 = vadd.f32 %v2094, %v2178
        %v2180 = vpop.f32.mrf.mxu0
        %v2181 = vpop.f32.mrf.mxu0
        %v2182 = vadd.f32 %v2094, %v2181
        %v2183 = vpop.f32.mrf.mxu0
        %2184 = vmatprep.mubr.bf16.mxu0 0
        %2185 = vmatmul.mubr.bf16.gmra.mxu0 %v2066
        %v2186 = vpop.f32.mrf.mxu0
        %v2187 = vadd.f32 %v2094, %v2186
        %v2188 = vpop.f32.mrf.mxu0
        %v2189 = vpop.f32.mrf.mxu0
        %v2190 = vadd.f32 %v2094, %v2189
        %v2191 = vpop.f32.mrf.mxu0
        %2192 = vmatprep.mubr.bf16.mxu0 0
        %2193 = vmatmul.mubr.bf16.gmra.mxu0 %v2067
        %v2194 = vpop.f32.mrf.mxu0
        %v2195 = vadd.f32 %v2094, %v2194
        %v2196 = vpop.f32.mrf.mxu0
        %v2197 = vpop.f32.mrf.mxu0
        %v2198 = vadd.f32 %v2094, %v2197
        %v2199 = vpop.f32.mrf.mxu0
        %2200 = vmatprep.mubr.bf16.mxu0 0
        %2201 = vmatmul.mubr.bf16.gmra.mxu0 %v2068
        %v2202 = vpop.f32.mrf.mxu0
        %v2203 = vadd.f32 %v2094, %v2202
        %v2204 = vpop.f32.mrf.mxu0
        %v2205 = vpop.f32.mrf.mxu0
        %v2206 = vadd.f32 %v2094, %v2205
        %v2207 = vpop.f32.mrf.mxu0
        %2208 = vmatprep.mubr.bf16.mxu0 0
        %2209 = vmatmul.mubr.bf16.gmra.mxu0 %v2069
        %v2210 = vpop.f32.mrf.mxu0
        %v2211 = vadd.f32 %v2094, %v2210
        %v2212 = vpop.f32.mrf.mxu0
        %v2213 = vpop.f32.mrf.mxu0
        %v2214 = vadd.f32 %v2094, %v2213
        %v2215 = vpop.f32.mrf.mxu0
        %2216 = vmatprep.mubr.bf16.mxu0 0
        %2217 = vmatmul.mubr.bf16.gmra.mxu0 %v2070
        %v2218 = vpop.f32.mrf.mxu0
        %v2219 = vadd.f32 %v2094, %v2218
        %v2220 = vpop.f32.mrf.mxu0
        %v2221 = vpop.f32.mrf.mxu0
        %v2222 = vadd.f32 %v2094, %v2221
        %v2223 = vpop.f32.mrf.mxu0
        %2224 = vmatprep.mubr.bf16.mxu0 0
        %2225 = vmatmul.mubr.bf16.gmra.mxu0 %v2071
        %v2226 = vpop.f32.mrf.mxu0
        %v2227 = vadd.f32 %v2094, %v2226
        %v2228 = vpop.f32.mrf.mxu0
        %v2229 = vpop.f32.mrf.mxu0
        %v2230 = vadd.f32 %v2094, %v2229
        %v2231 = vpop.f32.mrf.mxu0
        %2232 = vmatprep.mubr.bf16.mxu0 0
        %2233 = vmatmul.mubr.bf16.gmra.mxu0 %v2072
        %v2234 = vpop.f32.mrf.mxu0
        %v2235 = vadd.f32 %v2094, %v2234
        %v2236 = vpop.f32.mrf.mxu0
        %v2237 = vpop.f32.mrf.mxu0
        %v2238 = vadd.f32 %v2094, %v2237
        %v2239 = vpop.f32.mrf.mxu0
        %2240 = vdwg.mxu0
        %2241 = vmax.xlane.f32.xlu0 %v2179
        %v2242 = vpop.xlane.xlu0 %2241
        %2243 = vmax.xlane.f32.xlu0 %v2182
        %v2244 = vpop.xlane.xlu0 %2243
        %2245 = vmax.xlane.f32.xlu0 %v2187
        %v2246 = vpop.xlane.xlu0 %2245
        %2247 = vmax.xlane.f32.xlu0 %v2190
        %v2248 = vpop.xlane.xlu0 %2247
        %2249 = vmax.xlane.f32.xlu0 %v2195
        %v2250 = vpop.xlane.xlu0 %2249
        %2251 = vmax.xlane.f32.xlu0 %v2198
        %v2252 = vpop.xlane.xlu0 %2251
        %2253 = vmax.xlane.f32.xlu0 %v2203
        %v2254 = vpop.xlane.xlu0 %2253
        %2255 = vmax.xlane.f32.xlu0 %v2206
        %v2256 = vpop.xlane.xlu0 %2255
        %2257 = vmax.xlane.f32.xlu0 %v2211
        %v2258 = vpop.xlane.xlu0 %2257
        %2259 = vmax.xlane.f32.xlu0 %v2214
        %v2260 = vpop.xlane.xlu0 %2259
        %2261 = vmax.xlane.f32.xlu0 %v2219
        %v2262 = vpop.xlane.xlu0 %2261
        %2263 = vmax.xlane.f32.xlu0 %v2222
        %v2264 = vpop.xlane.xlu0 %2263
        %2265 = vmax.xlane.f32.xlu0 %v2227
        %v2266 = vpop.xlane.xlu0 %2265
        %2267 = vmax.xlane.f32.xlu0 %v2230
        %v2268 = vpop.xlane.xlu0 %2267
        %2269 = vmax.xlane.f32.xlu0 %v2235
        %v2270 = vpop.xlane.xlu0 %2269
        %2271 = vmax.xlane.f32.xlu0 %v2238
        %v2272 = vpop.xlane.xlu0 %2271
        %v2273 = vsub.f32 %v2179, %v2242
        %v2274 = vsub.f32 %v2182, %v2244
        %v2275 = vsub.f32 %v2187, %v2246
        %v2276 = vsub.f32 %v2190, %v2248
        %v2277 = vsub.f32 %v2195, %v2250
        %v2278 = vsub.f32 %v2198, %v2252
        %v2279 = vsub.f32 %v2203, %v2254
        %v2280 = vsub.f32 %v2206, %v2256
        %v2281 = vsub.f32 %v2211, %v2258
        %v2282 = vsub.f32 %v2214, %v2260
        %v2283 = vsub.f32 %v2219, %v2262
        %v2284 = vsub.f32 %v2222, %v2264
        %v2285 = vsub.f32 %v2227, %v2266
        %v2286 = vsub.f32 %v2230, %v2268
        %v2287 = vsub.f32 %v2235, %v2270
        %v2288 = vsub.f32 %v2238, %v2272
        %v2289 = vmul.f32 %v2273, 1.442695
        %v2290 = vpow.pop %v2289
        %v2291 = vmul.f32 %v2274, 1.442695
        %v2292 = vpow.pop %v2291
        %v2293 = vmul.f32 %v2275, 1.442695
        %v2294 = vpow.pop %v2293
        %v2295 = vmul.f32 %v2276, 1.442695
        %v2296 = vpow.pop %v2295
        %v2297 = vmul.f32 %v2277, 1.442695
        %v2298 = vpow.pop %v2297
        %v2299 = vmul.f32 %v2278, 1.442695
        %v2300 = vpow.pop %v2299
        %v2301 = vmul.f32 %v2279, 1.442695
        %v2302 = vpow.pop %v2301
        %v2303 = vmul.f32 %v2280, 1.442695
        %v2304 = vpow.pop %v2303
        %v2305 = vmul.f32 %v2281, 1.442695
        %v2306 = vpow.pop %v2305
        %v2307 = vmul.f32 %v2282, 1.442695
        %v2308 = vpow.pop %v2307
        %v2309 = vmul.f32 %v2283, 1.442695
        %v2310 = vpow.pop %v2309
        %v2311 = vmul.f32 %v2284, 1.442695
        %v2312 = vpow.pop %v2311
        %v2313 = vmul.f32 %v2285, 1.442695
        %v2314 = vpow.pop %v2313
        %v2315 = vmul.f32 %v2286, 1.442695
        %v2316 = vpow.pop %v2315
        %v2317 = vmul.f32 %v2287, 1.442695
        %v2318 = vpow.pop %v2317
        %v2319 = vmul.f32 %v2288, 1.442695
        %v2320 = vpow.pop %v2319
        %2321 = vadd.xlane.f32.xlu0 %v2290
        %v2322 = vpop.xlane.xlu0 %2321
        %2323 = vadd.xlane.f32.xlu0 %v2292
        %v2324 = vpop.xlane.xlu0 %2323
        %2325 = vadd.xlane.f32.xlu0 %v2294
        %v2326 = vpop.xlane.xlu0 %2325
        %2327 = vadd.xlane.f32.xlu0 %v2296
        %v2328 = vpop.xlane.xlu0 %2327
        %2329 = vadd.xlane.f32.xlu0 %v2298
        %v2330 = vpop.xlane.xlu0 %2329
        %2331 = vadd.xlane.f32.xlu0 %v2300
        %v2332 = vpop.xlane.xlu0 %2331
        %2333 = vadd.xlane.f32.xlu0 %v2302
        %v2334 = vpop.xlane.xlu0 %2333
        %2335 = vadd.xlane.f32.xlu0 %v2304
        %v2336 = vpop.xlane.xlu0 %2335
        %2337 = vadd.xlane.f32.xlu0 %v2306
        %v2338 = vpop.xlane.xlu0 %2337
        %2339 = vadd.xlane.f32.xlu0 %v2308
        %v2340 = vpop.xlane.xlu0 %2339
        %2341 = vadd.xlane.f32.xlu0 %v2310
        %v2342 = vpop.xlane.xlu0 %2341
        %2343 = vadd.xlane.f32.xlu0 %v2312
        %v2344 = vpop.xlane.xlu0 %2343
        %2345 = vadd.xlane.f32.xlu0 %v2314
        %v2346 = vpop.xlane.xlu0 %2345
        %2347 = vadd.xlane.f32.xlu0 %v2316
        %v2348 = vpop.xlane.xlu0 %2347
        %2349 = vadd.xlane.f32.xlu0 %v2318
        %v2350 = vpop.xlane.xlu0 %2349
        %2351 = vadd.xlane.f32.xlu0 %v2320
        %v2352 = vpop.xlane.xlu0 %2351
        %v2353 = vlog2.pop %v2322
        %v2354 = vmul.f32 %v2353, 0.6931472
        %v2355 = vlog2.pop %v2324
        %v2356 = vmul.f32 %v2355, 0.6931472
        %v2357 = vlog2.pop %v2326
        %v2358 = vmul.f32 %v2357, 0.6931472
        %v2359 = vlog2.pop %v2328
        %v2360 = vmul.f32 %v2359, 0.6931472
        %v2361 = vlog2.pop %v2330
        %v2362 = vmul.f32 %v2361, 0.6931472
        %v2363 = vlog2.pop %v2332
        %v2364 = vmul.f32 %v2363, 0.6931472
        %v2365 = vlog2.pop %v2334
        %v2366 = vmul.f32 %v2365, 0.6931472
        %v2367 = vlog2.pop %v2336
        %v2368 = vmul.f32 %v2367, 0.6931472
        %v2369 = vlog2.pop %v2338
        %v2370 = vmul.f32 %v2369, 0.6931472
        %v2371 = vlog2.pop %v2340
        %v2372 = vmul.f32 %v2371, 0.6931472
        %v2373 = vlog2.pop %v2342
        %v2374 = vmul.f32 %v2373, 0.6931472
        %v2375 = vlog2.pop %v2344
        %v2376 = vmul.f32 %v2375, 0.6931472
        %v2377 = vlog2.pop %v2346
        %v2378 = vmul.f32 %v2377, 0.6931472
        %v2379 = vlog2.pop %v2348
        %v2380 = vmul.f32 %v2379, 0.6931472
        %v2381 = vlog2.pop %v2350
        %v2382 = vmul.f32 %v2381, 0.6931472
        %v2383 = vlog2.pop %v2352
        %v2384 = vmul.f32 %v2383, 0.6931472
        %v2385 = vadd.f32 %v2242, %v2354
        %v2386 = vadd.f32 %v2244, %v2356
        %v2387 = vadd.f32 %v2246, %v2358
        %v2388 = vadd.f32 %v2248, %v2360
        %v2389 = vadd.f32 %v2250, %v2362
        %v2390 = vadd.f32 %v2252, %v2364
        %v2391 = vadd.f32 %v2254, %v2366
        %v2392 = vadd.f32 %v2256, %v2368
        %v2393 = vadd.f32 %v2258, %v2370
        %v2394 = vadd.f32 %v2260, %v2372
        %v2395 = vadd.f32 %v2262, %v2374
        %v2396 = vadd.f32 %v2264, %v2376
        %v2397 = vadd.f32 %v2266, %v2378
        %v2398 = vadd.f32 %v2268, %v2380
        %v2399 = vadd.f32 %v2270, %v2382
        %v2400 = vadd.f32 %v2272, %v2384
        %v2401 = vsub.f32 %v2179, %v2385
        %v2402 = vsub.f32 %v2182, %v2386
        %v2403 = vsub.f32 %v2187, %v2387
        %v2404 = vsub.f32 %v2190, %v2388
        %v2405 = vsub.f32 %v2195, %v2389
        %v2406 = vsub.f32 %v2198, %v2390
        %v2407 = vsub.f32 %v2203, %v2391
        %v2408 = vsub.f32 %v2206, %v2392
        %v2409 = vsub.f32 %v2211, %v2393
        %v2410 = vsub.f32 %v2214, %v2394
        %v2411 = vsub.f32 %v2219, %v2395
        %v2412 = vsub.f32 %v2222, %v2396
        %v2413 = vsub.f32 %v2227, %v2397
        %v2414 = vsub.f32 %v2230, %v2398
        %v2415 = vsub.f32 %v2235, %v2399
        %v2416 = vsub.f32 %v2238, %v2400
        %2417 = vst [vmem:[%s341] sm:$0xff] %v2401
        %2418 = vst [vmem:[%s341 + $0x8] sm:$0xff] %v2402
        %2419 = vst [vmem:[%s341 + $0x10] sm:$0xff] %v2403
        %2420 = vst [vmem:[%s341 + $0x18] sm:$0xff] %v2404
        %2421 = vst [vmem:[%s341 + $0x20] sm:$0xff] %v2405
        %2422 = vst [vmem:[%s341 + $0x28] sm:$0xff] %v2406
        %2423 = vst [vmem:[%s341 + $0x30] sm:$0xff] %v2407
        %2424 = vst [vmem:[%s341 + $0x38] sm:$0xff] %v2408
        %2425 = vst [vmem:[%s341 + $0x40] sm:$0xff] %v2409
        %2426 = vst [vmem:[%s341 + $0x48] sm:$0xff] %v2410
        %2427 = vst [vmem:[%s341 + $0x50] sm:$0xff] %v2411
        %2428 = vst [vmem:[%s341 + $0x58] sm:$0xff] %v2412
        %2429 = vst [vmem:[%s341 + $0x60] sm:$0xff] %v2413
        %2430 = vst [vmem:[%s341 + $0x68] sm:$0xff] %v2414
        %2431 = vst [vmem:[%s341 + $0x70] sm:$0xff] %v2415
        %2432 = vst [vmem:[%s341 + $0x78] sm:$0xff] %v2416
        %s2433 = sand.u32 %s186, 1
        %s2434 = scalar_lea.sflag [#allocation4], %s2433
        %s2435 = sand.u32 %s186, 1
        %s2436 = smul.addr %s2435, 128
        %s2437 = scalar_lea.vmem [#allocation10], %s2436
        // Predicated region
        $region65: #{tpu_custom_call.1} parent=47 // pred_check
          %p2438 = pneg %p196
        $region66: #{tpu_custom_call.1} parent=47 // pred_check_branch
          %2440 = sbr.rel (%p2438) target = $region68
        $region67: #{tpu_custom_call.1} parent=47 // pred_region
          %s2441 = smul.u32 16, %s26
          %s2443 = ssub.s32 2048, 2048
          %2444 = vsyncadd %s2434, %s2443
          %s2445 = smul.addr %s2441, 128
          %s2446 = scalar_lea.hbm %s7, %s2445
          %s2447 = sshll.u32 %s2437, 4
          %s2448 = int_to_ptr.vmem [resolvable:$true] %s2447
          %2453 = dma.vmem_to_hbm [thread:$0]  %s2448, 2048, %s2446, %s2434, 128, 128, 8
        $region68: #{tpu_custom_call.1} parent=47 // pred_fallthru
          _
      $region48: #{tpu_custom_call.1} parent=5 // pred_fallthru
        _
      %p2454 = scmp.le.s32.totalorder 2, %s21
      // Predicated region
      $region69: #{tpu_custom_call.1} parent=5 // pred_check
        %p2455 = pneg %p2454
      $region70: #{tpu_custom_call.1} parent=5 // pred_check_branch
        %2457 = sbr.rel (%p2455) target = $region72
      $region71: #{tpu_custom_call.1} parent=5 // pred_region
        %s2458 = ssub.s32 %s21, 2
        // Predicated region
        $region73: #{tpu_custom_call.1} parent=71 // pred_check
          %p2459 = pneg %p202
        $region74: #{tpu_custom_call.1} parent=71 // pred_check_branch
          %2461 = sbr.rel (%p2459) target = $region76
        $region75: #{tpu_custom_call.1} parent=71 // pred_region
          %s2462 = sand.u32 %s187, 1
          %s2463 = scalar_lea.sflag [#allocation4], %s2462
          %s2464 = sand.u32 %s187, 1
          %s2465 = smul.addr %s2464, 128
          %s2466 = scalar_lea.vmem [#allocation10], %s2465
          %2467 = dma.done %s2463, 2048
        $region76: #{tpu_custom_call.1} parent=71 // pred_fallthru
          _
      $region72: #{tpu_custom_call.1} parent=5 // pred_fallthru
        _
    $region6: #{tpu_custom_call.1} parent=1 // loop_footer
      %s25 = sadd.s32 1, %s21
    $region7: #{tpu_custom_call.1} parent=1 // loop_footer_branch
      %20 = sbr.rel target = $region3
    $region8: #{tpu_custom_call.1} parent=1 // loop_exit
      _
    %2468 = vsyncpa [#allocation3], 1
    %s2469 = scalar_lea.sflag [#allocation3], 1
    %2470 = vsyncpa %s2469, 1
    %2471 = vsyncpa [#allocation6], 1
    %2472 = vsyncpa [#allocation9], 1
    %2473 = vsyncpa [#allocation4], 1
    %s2474 = scalar_lea.sflag [#allocation4], 1
    %2475 = vsyncpa %s2474, 1

</llo_original>
